<compile_context>
chip_gen: v5e
topology: v5e:2x2
jax: 0.10.0
libtpu: 0.0.40
codegen_flags: <defaults>
</compile_context>

<pallas_src>
import jax
import jax.numpy as jnp
from jax import lax
from jax.experimental import pallas as pl
from jax.experimental.pallas import tpu as pltpu

# ----------------------------- model config (small) -------------------------
B = 2          # batch
C = 3          # image channels
IMG = 16       # image height/width
P = 8          # patch size
D = 32         # hidden size
H = 4          # attention heads
HD = D // H    # head dim
MLP = 64       # intermediate size
LAYERS = 2     # encoder layers
NP = (IMG // P) ** 2        # num patches = 4
T = NP + 1                  # tokens = 5 (CLS + patches)
BT = B * T                  # flattened token rows
CPP = C * P * P             # im2col patch width
EPS = 1e-12                 # HF ViT layernorm eps

# rows inside the packed "misc" array
_ROW_FIN_G = 0
_ROW_FIN_B = 1
_ROW_TOK0 = 2               # token-bias table (CLS + patch_b + pos), BT rows

# rows inside the packed per-layer "small" array
_ROW_LN1G, _ROW_LN1B, _ROW_BO, _ROW_LN2G, _ROW_LN2B, _ROW_B2 = range(6)


# ----------------------------- in-kernel helpers -----------------------------
def _layernorm(x, g, b):
    mu = jnp.mean(x, axis=-1, keepdims=True)
    var = jnp.mean(jnp.square(x - mu), axis=-1, keepdims=True)
    return (x - mu) * lax.rsqrt(var + EPS) * g + b


def _erf(x):
    # Abramowitz & Stegun 7.1.26 (|err| <= 1.5e-7): gives HF ViT's exact-erf
    # GELU semantics using only exp/mul/div (no erf primitive needed).
    a1, a2, a3, a4, a5 = (0.254829592, -0.284496736, 1.421413741,
                          -1.453152027, 1.061405429)
    pp = 0.3275911
    ax = jnp.abs(x)
    t = 1.0 / (1.0 + pp * ax)
    poly = ((((a5 * t + a4) * t + a3) * t + a2) * t + a1) * t
    y = 1.0 - poly * jnp.exp(-ax * ax)
    return jnp.where(x >= 0.0, y, -y)


def _gelu_exact(x):
    return 0.5 * x * (1.0 + _erf(x * 0.7071067811865476))


# ----------------------------- fused kernel ----------------------------------
def vit_fused_kernel(patches_ref, patch_w_ref, misc_ref, attn_bias_ref,
                     wqkv_ref, bqkv_ref, wo_ref, w1_ref, b1_ref, w2_ref,
                     small_ref, out_ref):
    f32, bf16 = jnp.float32, jnp.bfloat16

    misc = misc_ref[...]                                     # (2 + BT, D) f32
    fin_g = misc[_ROW_FIN_G:_ROW_FIN_G + 1, :]
    fin_b = misc[_ROW_FIN_B:_ROW_FIN_B + 1, :]
    tok_bias = misc[_ROW_TOK0:_ROW_TOK0 + BT, :]             # (BT, D)
    attn_bias = attn_bias_ref[...]                           # (H, BT, BT)? no: (BT, BT)

    # ---- patch embedding (im2col matmul, kernel == stride conv) ----
    # conv bias is folded into tok_bias on the host.
    pe = jnp.dot(patches_ref[...].astype(bf16), patch_w_ref[...],
                 preferred_element_type=f32)                 # (B*NP, D)

    # ---- token assembly: [CLS; patches] per batch element ----
    # CLS content + patch bias + positional embedding all come from tok_bias.
    zero_row = jnp.zeros((1, D), f32)
    parts = []
    for b in range(B):
        parts.append(zero_row)
        parts.append(pe[b * NP:(b + 1) * NP, :])
    toks = jnp.concatenate(parts, axis=0) + tok_bias         # (BT, D)

    def split_heads(x):                                      # (BT, D)->(H, BT, HD)
        return jnp.stack([x[:, hh * HD:(hh + 1) * HD] for hh in range(H)],
                         axis=0)

    def layer_body(l, toks):
        sm = small_ref[l]                                    # (6, D)
        ln1g = sm[_ROW_LN1G:_ROW_LN1G + 1, :]
        ln1b = sm[_ROW_LN1B:_ROW_LN1B + 1, :]
        bo = sm[_ROW_BO:_ROW_BO + 1, :]
        ln2g = sm[_ROW_LN2G:_ROW_LN2G + 1, :]
        ln2b = sm[_ROW_LN2B:_ROW_LN2B + 1, :]
        b2 = sm[_ROW_B2:_ROW_B2 + 1, :]

        # --- self-attention (pre-LN), fused QKV projection ---
        h = _layernorm(toks, ln1g, ln1b)
        qkv = jnp.dot(h.astype(bf16), wqkv_ref[l],
                      preferred_element_type=f32) + bqkv_ref[l]   # (BT, 3D)

        qh = split_heads(qkv[:, 0:D]).astype(bf16)           # (H, BT, HD)
        kh = split_heads(qkv[:, D:2 * D]).astype(bf16)
        vh = split_heads(qkv[:, 2 * D:3 * D]).astype(bf16)

        # 1/sqrt(HD) already folded into wq/bq on the host.
        s = jnp.einsum('hqd,hkd->hqk', qh, kh,
                       preferred_element_type=f32) + attn_bias    # (H, BT, BT)
        s = s - jnp.max(s, axis=-1, keepdims=True)
        p = jnp.exp(s)
        p = p * pl.reciprocal(jnp.sum(p, axis=-1, keepdims=True), approx=True)
        ctx_h = jnp.einsum('hqk,hkd->hqd', p.astype(bf16), vh,
                           preferred_element_type=f32)            # (H, BT, HD)
        ctx = jnp.concatenate([ctx_h[hh] for hh in range(H)], axis=-1)

        attn_out = jnp.dot(ctx.astype(bf16), wo_ref[l],
                           preferred_element_type=f32) + bo
        y = toks + attn_out

        # --- MLP (pre-LN), exact (erf) GELU as in HF ViT ---
        h2 = _layernorm(y, ln2g, ln2b)
        m = jnp.dot(h2.astype(bf16), w1_ref[l],
                    preferred_element_type=f32) + b1_ref[l]
        m = _gelu_exact(m)
        m = jnp.dot(m.astype(bf16), w2_ref[l],
                    preferred_element_type=f32) + b2
        return y + m

    toks = lax.fori_loop(0, LAYERS, layer_body, toks, unroll=True)

    # ---- final layernorm -> last_hidden_state (flattened) ----
    out_ref[...] = _layernorm(toks, fin_g, fin_b)


# ----------------------------- pallas_call wrapper ----------------------------
def _full_spec(shape):
    nd = len(shape)
    return pl.BlockSpec(shape, lambda i, _nd=nd: (0,) * _nd)


def vit_fused(patches, packed):
    args = (patches, packed["patch_w"], packed["misc"], packed["attn_bias"],
            packed["wqkv"], packed["bqkv"], packed["wo"],
            packed["w1"], packed["b1"], packed["w2"], packed["small"])
    return pl.pallas_call(
        vit_fused_kernel,
        out_shape=jax.ShapeDtypeStruct((BT, D), jnp.float32),
        grid_spec=pltpu.PrefetchScalarGridSpec(
            num_scalar_prefetch=0,
            grid=(1,),
            in_specs=[_full_spec(a.shape) for a in args],
            out_specs=_full_spec((BT, D)),
        ),
        compiler_params=pltpu.CompilerParams(
            dimension_semantics=("arbitrary",)),  # tiny job: keep on one TC (v7x)
    )(*args)


# ----------------------------- parameter init / packing -----------------------
def init_params(key):
    ks = iter(jax.random.split(key, 64))

    def dense(kin, kout):
        w = jax.random.normal(next(ks), (kin, kout), jnp.float32) / jnp.sqrt(kin)
        return w, jnp.zeros((1, kout), jnp.float32)

    params = {}
    params["patch_w"], params["patch_b"] = dense(CPP, D)
    params["cls"] = jax.random.normal(next(ks), (1, D), jnp.float32) * 0.02
    params["pos"] = jax.random.normal(next(ks), (T, D), jnp.float32) * 0.02

    layers = []
    for _ in range(LAYERS):
        lp = {}
        lp["ln1g"] = jnp.ones((1, D), jnp.float32)
        lp["ln1b"] = jnp.zeros((1, D), jnp.float32)
        lp["wq"], lp["bq"] = dense(D, D)
        lp["wk"], lp["bk"] = dense(D, D)
        lp["wv"], lp["bv"] = dense(D, D)
        lp["wo"], lp["bo"] = dense(D, D)
        lp["ln2g"] = jnp.ones((1, D), jnp.float32)
        lp["ln2b"] = jnp.zeros((1, D), jnp.float32)
        lp["w1"], lp["b1"] = dense(D, MLP)
        lp["w2"], lp["b2"] = dense(MLP, D)
        layers.append(lp)
    params["layers"] = layers

    params["final_g"] = jnp.ones((1, D), jnp.float32)
    params["final_b"] = jnp.zeros((1, D), jnp.float32)
    return params


def pack_params(params):
    """One-time host-side packing: stack per-layer weights over a layer axis,
    fuse Q|K|V, fold the 1/sqrt(HD) attention scale into wq/bq, fold conv
    bias + CLS + positional embeddings into one (BT, D) token-bias table,
    cast the big matrices to bf16 (MXU inputs), and pack all small (1, D)
    vectors."""
    scale = 1.0 / (HD ** 0.5)
    wqkv, bqkv, wo, w1, b1, w2, small = [], [], [], [], [], [], []
    for lp in params["layers"]:
        wqkv.append(jnp.concatenate([lp["wq"] * scale, lp["wk"], lp["wv"]],
                                    axis=1))                       # (D, 3D)
        bqkv.append(jnp.concatenate([lp["bq"] * scale, lp["bk"], lp["bv"]],
                                    axis=1))                       # (1, 3D)
        wo.append(lp["wo"])
        w1.append(lp["w1"])
        b1.append(lp["b1"])
        w2.append(lp["w2"])
        small.append(jnp.concatenate(
            [lp["ln1g"], lp["ln1b"], lp["bo"],
             lp["ln2g"], lp["ln2b"], lp["b2"]], axis=0))           # (6, D)

    # token-bias table: CLS row = cls + pos[0]; patch rows = patch_b + pos[1+i]
    pos = params["pos"]
    cls_row = params["cls"] + pos[0:1, :]                          # (1, D)
    patch_rows = params["patch_b"] + pos[1:, :]                    # (NP, D)
    tok_bias = jnp.tile(jnp.concatenate([cls_row, patch_rows], axis=0),
                        (B, 1))                                    # (BT, D)

    misc = jnp.concatenate(
        [params["final_g"], params["final_b"], tok_bias], axis=0)  # (2+BT, D)

    batch_id = jnp.arange(BT) // T
    attn_bias = jnp.where(batch_id[:, None] == batch_id[None, :],
                          0.0, -1e30).astype(jnp.float32)          # (BT, BT)

    bf16 = jnp.bfloat16
    return {
        "patch_w": params["patch_w"].astype(bf16),
        "misc": misc,
        "attn_bias": attn_bias,
        "wqkv": jnp.stack(wqkv).astype(bf16),
        "bqkv": jnp.stack(bqkv),
        "wo": jnp.stack(wo).astype(bf16),
        "w1": jnp.stack(w1).astype(bf16),
        "b1": jnp.stack(b1),
        "w2": jnp.stack(w2).astype(bf16),
        "small": jnp.stack(small),
    }


# ----------------------------- forward (ViT.forward equivalent) ---------------
@jax.jit
def vit_forward(x, packed):
    # x: (B, C, IMG, IMG) NCHW, like the PyTorch module's input.
    # im2col for the patch conv (kernel == stride == P): glue in plain JAX.
    hp = IMG // P
    patches = x.reshape(B, C, hp, P, hp, P)
    patches = patches.transpose(0, 2, 4, 1, 3, 5)          # (B, hp, hp, C, P, P)
    patches = patches.reshape(B * NP, CPP)

    flat = vit_fused(patches, packed)                      # (B*T, D)
    last_hidden = flat.reshape(B, T, D)

    late_feat = last_hidden[:, 1:, :]                      # (B, NP, D)
    cls = jnp.squeeze(last_hidden[:, :1, :], axis=1)       # (B, D): token dim only
    return cls, {"late_feat": late_feat}


# ----------------------------- pure-JAX reference ------------------------------
def vit_reference(x, params):
    f32, bf16 = jnp.float32, jnp.bfloat16
    hp = IMG // P
    patches = x.reshape(B, C, hp, P, hp, P).transpose(0, 2, 4, 1, 3, 5)
    patches = patches.reshape(B, NP, CPP)

    def mm(a, w):
        return jnp.einsum('...k,kd->...d', a.astype(bf16), w.astype(bf16),
                          preferred_element_type=f32)

    def ln(v, g, b):
        mu = jnp.mean(v, -1, keepdims=True)
        var = jnp.mean(jnp.square(v - mu), -1, keepdims=True)
        return (v - mu) * lax.rsqrt(var + EPS) * g + b

    pe = mm(patches, params["patch_w"]) + params["patch_b"]
    cls = jnp.broadcast_to(params["cls"], (B, 1, D))
    toks = jnp.concatenate([cls, pe], axis=1) + params["pos"][None]

    for lp in params["layers"]:
        h = ln(toks, lp["ln1g"], lp["ln1b"])
        q = mm(h, lp["wq"]) + lp["bq"]
        k = mm(h, lp["wk"]) + lp["bk"]
        v = mm(h, lp["wv"]) + lp["bv"]

        def heads(z):
            return z.reshape(B, T, H, HD).transpose(0, 2, 1, 3)

        qh, kh, vh = heads(q), heads(k), heads(v)
        s = jnp.einsum('bhqd,bhkd->bhqk', qh.astype(bf16), kh.astype(bf16),
                       preferred_element_type=f32) / (HD ** 0.5)
        p = jax.nn.softmax(s, axis=-1)
        ctx = jnp.einsum('bhqk,bhkd->bhqd', p.astype(bf16), vh.astype(bf16),
                         preferred_element_type=f32)
        ctx = ctx.transpose(0, 2, 1, 3).reshape(B, T, D)
        y = toks + mm(ctx, lp["wo"]) + lp["bo"]

        h2 = ln(y, lp["ln2g"], lp["ln2b"])
        m = mm(h2, lp["w1"]) + lp["b1"]
        m = jax.nn.gelu(m, approximate=False)
        m = mm(m, lp["w2"]) + lp["b2"]
        toks = y + m

    return ln(toks, params["final_g"], params["final_b"])


if __name__ == "__main__":
    key = jax.random.PRNGKey(0)
    k_x, k_p = jax.random.split(key)
    x = jax.random.normal(k_x, (B, C, IMG, IMG), jnp.float32)

    # TODO(synk): pretrained HF weights / AutoImageProcessor cannot be loaded
    # in-script; random-initialized weights with the same architecture are used.
    params = init_params(k_p)
    packed = pack_params(params)

    cls, aux = vit_forward(x, packed)
    jax.block_until_ready((cls, aux["late_feat"]))

    assert cls.shape == (B, D)
    assert aux["late_feat"].shape == (B, NP, D)

    # correctness check vs. the pure-JAX reference (bf16 matmuls, f32 acc)
    ref_last = vit_reference(x, params)
    got_last = jnp.concatenate([cls[:, None, :], aux["late_feat"]], axis=1)
    err = float(jnp.max(jnp.abs(got_last - ref_last)))
    assert err < 8e-2, f"max abs err vs reference: {err}"

    print("KERNEL_OK")
</pallas_src>

<mosaic_0001>
module attributes {stable_mosaic.version = 11 : i64} {
  func.func @vit_fused_kernel(%arg0: i32, %arg1: memref<8x192xf32, #tpu.memory_space<vmem>>, %arg2: memref<192x32xbf16, #tpu.memory_space<vmem>>, %arg3: memref<12x32xf32, #tpu.memory_space<vmem>>, %arg4: memref<10x10xf32, #tpu.memory_space<vmem>>, %arg5: memref<2x32x96xbf16, #tpu.memory_space<vmem>>, %arg6: memref<2x1x96xf32, #tpu.memory_space<vmem>>, %arg7: memref<2x32x32xbf16, #tpu.memory_space<vmem>>, %arg8: memref<2x32x64xbf16, #tpu.memory_space<vmem>>, %arg9: memref<2x1x64xf32, #tpu.memory_space<vmem>>, %arg10: memref<2x64x32xbf16, #tpu.memory_space<vmem>>, %arg11: memref<2x6x32xf32, #tpu.memory_space<vmem>>, %arg12: memref<10x32xf32, #tpu.memory_space<vmem>>) attributes {dimension_semantics = [#tpu.dimension_semantics<arbitrary>], iteration_bounds = array<i64: 1>, scalar_prefetch = 0 : i64, scratch_operands = 0 : i64, tpu.core_type = #tpu.core_type<tc>, window_params = [{pipeline_mode = #tpu.pipeline_mode<synchronous>, transform_indices = @transform_0, window_bounds = array<i64: 8, 192>}, {pipeline_mode = #tpu.pipeline_mode<synchronous>, transform_indices = @transform_1, window_bounds = array<i64: 192, 32>}, {pipeline_mode = #tpu.pipeline_mode<synchronous>, transform_indices = @transform_2, window_bounds = array<i64: 12, 32>}, {pipeline_mode = #tpu.pipeline_mode<synchronous>, transform_indices = @transform_3, window_bounds = array<i64: 10, 10>}, {pipeline_mode = #tpu.pipeline_mode<synchronous>, transform_indices = @transform_4, window_bounds = array<i64: 2, 32, 96>}, {pipeline_mode = #tpu.pipeline_mode<synchronous>, transform_indices = @transform_5, window_bounds = array<i64: 2, 1, 96>}, {pipeline_mode = #tpu.pipeline_mode<synchronous>, transform_indices = @transform_6, window_bounds = array<i64: 2, 32, 32>}, {pipeline_mode = #tpu.pipeline_mode<synchronous>, transform_indices = @transform_7, window_bounds = array<i64: 2, 32, 64>}, {pipeline_mode = #tpu.pipeline_mode<synchronous>, transform_indices = @transform_8, window_bounds = array<i64: 2, 1, 64>}, {pipeline_mode = #tpu.pipeline_mode<synchronous>, transform_indices = @transform_9, window_bounds = array<i64: 2, 64, 32>}, {pipeline_mode = #tpu.pipeline_mode<synchronous>, transform_indices = @transform_10, window_bounds = array<i64: 2, 6, 32>}, {pipeline_mode = #tpu.pipeline_mode<synchronous>, transform_indices = @transform_11, window_bounds = array<i64: 10, 32>}]} {
    %c0 = arith.constant 0 : index
    %c0_0 = arith.constant 0 : index
    %0 = vector.load %arg3[%c0, %c0_0] : memref<12x32xf32, #tpu.memory_space<vmem>>, vector<12x32xf32>
    %1 = vector.extract_strided_slice %0 {offsets = [0, 0], sizes = [1, 32], strides = [1, 1]} : vector<12x32xf32> to vector<1x32xf32>
    %2 = vector.extract_strided_slice %0 {offsets = [1, 0], sizes = [1, 32], strides = [1, 1]} : vector<12x32xf32> to vector<1x32xf32>
    %3 = vector.extract_strided_slice %0 {offsets = [2, 0], sizes = [10, 32], strides = [1, 1]} : vector<12x32xf32> to vector<10x32xf32>
    %c0_1 = arith.constant 0 : index
    %c0_2 = arith.constant 0 : index
    %4 = vector.load %arg4[%c0_1, %c0_2] : memref<10x10xf32, #tpu.memory_space<vmem>>, vector<10x10xf32>
    %c0_3 = arith.constant 0 : index
    %c0_4 = arith.constant 0 : index
    %5 = vector.load %arg1[%c0_3, %c0_4] : memref<8x192xf32, #tpu.memory_space<vmem>>, vector<8x192xf32>
    %6 = arith.truncf %5 : vector<8x192xf32> to vector<8x192xbf16>
    %c0_5 = arith.constant 0 : index
    %c0_6 = arith.constant 0 : index
    %7 = vector.load %arg2[%c0_5, %c0_6] : memref<192x32xbf16, #tpu.memory_space<vmem>>, vector<192x32xbf16>
    %cst = arith.constant dense<0.000000e+00> : vector<8x32xf32>
    %8 = tpu.matmul %6, %7, %cst {dimension_numbers = #tpu.dot_dimension_numbers<[1], [0], [0], [1], [0, 0, 1, 1], [], []>} : vector<8x192xbf16>, vector<192x32xbf16>, vector<8x32xf32> -> vector<8x32xf32>
    %cst_7 = arith.constant 0.000000e+00 : f32
    %9 = vector.broadcast %cst_7 : f32 to vector<1x32xf32>
    %10 = vector.extract_strided_slice %8 {offsets = [0, 0], sizes = [4, 32], strides = [1, 1]} : vector<8x32xf32> to vector<4x32xf32>
    %11 = vector.extract_strided_slice %8 {offsets = [4, 0], sizes = [4, 32], strides = [1, 1]} : vector<8x32xf32> to vector<4x32xf32>
    %12 = tpu.concatenate %9, %10, %9, %11 in 0 : vector<1x32xf32>, vector<4x32xf32>, vector<1x32xf32>, vector<4x32xf32> -> vector<10x32xf32>
    %13 = arith.addf %12, %3 : vector<10x32xf32>
    %c0_i32 = arith.constant 0 : i32
    %14 = arith.index_cast %c0_i32 : i32 to index
    %c0_8 = arith.constant 0 : index
    %c0_9 = arith.constant 0 : index
    %15 = vector.load %arg11[%14, %c0_8, %c0_9] : memref<2x6x32xf32, #tpu.memory_space<vmem>>, vector<1x6x32xf32>
    %16 = vector.shape_cast %15 : vector<1x6x32xf32> to vector<6x32xf32>
    %17 = vector.extract_strided_slice %16 {offsets = [0, 0], sizes = [1, 32], strides = [1, 1]} : vector<6x32xf32> to vector<1x32xf32>
    %18 = vector.extract_strided_slice %16 {offsets = [1, 0], sizes = [1, 32], strides = [1, 1]} : vector<6x32xf32> to vector<1x32xf32>
    %19 = vector.extract_strided_slice %16 {offsets = [2, 0], sizes = [1, 32], strides = [1, 1]} : vector<6x32xf32> to vector<1x32xf32>
    %20 = vector.extract_strided_slice %16 {offsets = [3, 0], sizes = [1, 32], strides = [1, 1]} : vector<6x32xf32> to vector<1x32xf32>
    %21 = vector.extract_strided_slice %16 {offsets = [4, 0], sizes = [1, 32], strides = [1, 1]} : vector<6x32xf32> to vector<1x32xf32>
    %22 = vector.extract_strided_slice %16 {offsets = [5, 0], sizes = [1, 32], strides = [1, 1]} : vector<6x32xf32> to vector<1x32xf32>
    %cst_10 = arith.constant dense<0.000000e+00> : vector<10xf32>
    %23 = vector.multi_reduction <add>, %13, %cst_10 [1] : vector<10x32xf32> to vector<10xf32>
    %24 = vector.shape_cast %23 : vector<10xf32> to vector<10x1xf32>
    %cst_11 = arith.constant 3.200000e+01 : f32
    %25 = vector.broadcast %cst_11 : f32 to vector<10x1xf32>
    %26 = arith.divf %24, %25 : vector<10x1xf32>
    %27 = vector.broadcast %26 : vector<10x1xf32> to vector<10x32xf32>
    %28 = arith.subf %13, %27 : vector<10x32xf32>
    %29 = arith.mulf %28, %28 : vector<10x32xf32>
    %cst_12 = arith.constant dense<0.000000e+00> : vector<10xf32>
    %30 = vector.multi_reduction <add>, %29, %cst_12 [1] : vector<10x32xf32> to vector<10xf32>
    %31 = vector.shape_cast %30 : vector<10xf32> to vector<10x1xf32>
    %cst_13 = arith.constant 3.200000e+01 : f32
    %32 = vector.broadcast %cst_13 : f32 to vector<10x1xf32>
    %33 = arith.divf %31, %32 : vector<10x1xf32>
    %34 = vector.broadcast %26 : vector<10x1xf32> to vector<10x32xf32>
    %35 = arith.subf %13, %34 : vector<10x32xf32>
    %cst_14 = arith.constant 9.99999996E-13 : f32
    %36 = vector.broadcast %cst_14 : f32 to vector<10x1xf32>
    %37 = arith.addf %33, %36 : vector<10x1xf32>
    %38 = math.rsqrt %37 : vector<10x1xf32>
    %39 = vector.broadcast %38 : vector<10x1xf32> to vector<10x32xf32>
    %40 = arith.mulf %35, %39 : vector<10x32xf32>
    %41 = vector.broadcast %17 : vector<1x32xf32> to vector<10x32xf32>
    %42 = arith.mulf %40, %41 : vector<10x32xf32>
    %43 = vector.broadcast %18 : vector<1x32xf32> to vector<10x32xf32>
    %44 = arith.addf %42, %43 : vector<10x32xf32>
    %45 = arith.truncf %44 : vector<10x32xf32> to vector<10x32xbf16>
    %46 = arith.index_cast %c0_i32 : i32 to index
    %c0_15 = arith.constant 0 : index
    %c0_16 = arith.constant 0 : index
    %47 = vector.load %arg5[%46, %c0_15, %c0_16] : memref<2x32x96xbf16, #tpu.memory_space<vmem>>, vector<1x32x96xbf16>
    %48 = vector.shape_cast %47 : vector<1x32x96xbf16> to vector<32x96xbf16>
    %cst_17 = arith.constant dense<0.000000e+00> : vector<10x96xf32>
    %49 = tpu.matmul %45, %48, %cst_17 {dimension_numbers = #tpu.dot_dimension_numbers<[1], [0], [0], [1], [0, 0, 1, 1], [], []>} : vector<10x32xbf16>, vector<32x96xbf16>, vector<10x96xf32> -> vector<10x96xf32>
    %50 = arith.index_cast %c0_i32 : i32 to index
    %c0_18 = arith.constant 0 : index
    %c0_19 = arith.constant 0 : index
    %51 = vector.load %arg6[%50, %c0_18, %c0_19] : memref<2x1x96xf32, #tpu.memory_space<vmem>>, vector<1x1x96xf32>
    %52 = vector.shape_cast %51 : vector<1x1x96xf32> to vector<1x96xf32>
    %53 = vector.broadcast %52 : vector<1x96xf32> to vector<10x96xf32>
    %54 = arith.addf %49, %53 : vector<10x96xf32>
    %55 = vector.extract_strided_slice %54 {offsets = [0, 0], sizes = [10, 32], strides = [1, 1]} : vector<10x96xf32> to vector<10x32xf32>
    %56 = vector.extract_strided_slice %55 {offsets = [0, 0], sizes = [10, 8], strides = [1, 1]} : vector<10x32xf32> to vector<10x8xf32>
    %57 = vector.extract_strided_slice %55 {offsets = [0, 8], sizes = [10, 8], strides = [1, 1]} : vector<10x32xf32> to vector<10x8xf32>
    %58 = vector.extract_strided_slice %55 {offsets = [0, 16], sizes = [10, 8], strides = [1, 1]} : vector<10x32xf32> to vector<10x8xf32>
    %59 = vector.extract_strided_slice %55 {offsets = [0, 24], sizes = [10, 8], strides = [1, 1]} : vector<10x32xf32> to vector<10x8xf32>
    %60 = vector.shape_cast %56 : vector<10x8xf32> to vector<1x10x8xf32>
    %61 = vector.shape_cast %57 : vector<10x8xf32> to vector<1x10x8xf32>
    %62 = vector.shape_cast %58 : vector<10x8xf32> to vector<1x10x8xf32>
    %63 = vector.shape_cast %59 : vector<10x8xf32> to vector<1x10x8xf32>
    %64 = tpu.concatenate %60, %61, %62, %63 in 0 : vector<1x10x8xf32>, vector<1x10x8xf32>, vector<1x10x8xf32>, vector<1x10x8xf32> -> vector<4x10x8xf32>
    %65 = arith.truncf %64 : vector<4x10x8xf32> to vector<4x10x8xbf16>
    %66 = vector.extract_strided_slice %54 {offsets = [0, 32], sizes = [10, 32], strides = [1, 1]} : vector<10x96xf32> to vector<10x32xf32>
    %67 = vector.extract_strided_slice %66 {offsets = [0, 0], sizes = [10, 8], strides = [1, 1]} : vector<10x32xf32> to vector<10x8xf32>
    %68 = vector.extract_strided_slice %66 {offsets = [0, 8], sizes = [10, 8], strides = [1, 1]} : vector<10x32xf32> to vector<10x8xf32>
    %69 = vector.extract_strided_slice %66 {offsets = [0, 16], sizes = [10, 8], strides = [1, 1]} : vector<10x32xf32> to vector<10x8xf32>
    %70 = vector.extract_strided_slice %66 {offsets = [0, 24], sizes = [10, 8], strides = [1, 1]} : vector<10x32xf32> to vector<10x8xf32>
    %71 = vector.shape_cast %67 : vector<10x8xf32> to vector<1x10x8xf32>
    %72 = vector.shape_cast %68 : vector<10x8xf32> to vector<1x10x8xf32>
    %73 = vector.shape_cast %69 : vector<10x8xf32> to vector<1x10x8xf32>
    %74 = vector.shape_cast %70 : vector<10x8xf32> to vector<1x10x8xf32>
    %75 = tpu.concatenate %71, %72, %73, %74 in 0 : vector<1x10x8xf32>, vector<1x10x8xf32>, vector<1x10x8xf32>, vector<1x10x8xf32> -> vector<4x10x8xf32>
    %76 = arith.truncf %75 : vector<4x10x8xf32> to vector<4x10x8xbf16>
    %77 = vector.extract_strided_slice %54 {offsets = [0, 64], sizes = [10, 32], strides = [1, 1]} : vector<10x96xf32> to vector<10x32xf32>
    %78 = vector.extract_strided_slice %77 {offsets = [0, 0], sizes = [10, 8], strides = [1, 1]} : vector<10x32xf32> to vector<10x8xf32>
    %79 = vector.extract_strided_slice %77 {offsets = [0, 8], sizes = [10, 8], strides = [1, 1]} : vector<10x32xf32> to vector<10x8xf32>
    %80 = vector.extract_strided_slice %77 {offsets = [0, 16], sizes = [10, 8], strides = [1, 1]} : vector<10x32xf32> to vector<10x8xf32>
    %81 = vector.extract_strided_slice %77 {offsets = [0, 24], sizes = [10, 8], strides = [1, 1]} : vector<10x32xf32> to vector<10x8xf32>
    %82 = vector.shape_cast %78 : vector<10x8xf32> to vector<1x10x8xf32>
    %83 = vector.shape_cast %79 : vector<10x8xf32> to vector<1x10x8xf32>
    %84 = vector.shape_cast %80 : vector<10x8xf32> to vector<1x10x8xf32>
    %85 = vector.shape_cast %81 : vector<10x8xf32> to vector<1x10x8xf32>
    %86 = tpu.concatenate %82, %83, %84, %85 in 0 : vector<1x10x8xf32>, vector<1x10x8xf32>, vector<1x10x8xf32>, vector<1x10x8xf32> -> vector<4x10x8xf32>
    %87 = arith.truncf %86 : vector<4x10x8xf32> to vector<4x10x8xbf16>
    "tpu.trace_start"() <{level = 10 : i32, message = "hqd,hkd->hqk"}> : () -> ()
    %cst_20 = arith.constant dense<0.000000e+00> : vector<4x10x10xf32>
    %88 = tpu.matmul %65, %76, %cst_20 {dimension_numbers = #tpu.dot_dimension_numbers<[2], [2], [1], [1], [0, 0, 0, 1, 1, 1], [0], [0]>} : vector<4x10x8xbf16>, vector<4x10x8xbf16>, vector<4x10x10xf32> -> vector<4x10x10xf32>
    "tpu.trace_stop"() : () -> ()
    %89 = vector.shape_cast %4 : vector<10x10xf32> to vector<1x10x10xf32>
    %90 = vector.broadcast %89 : vector<1x10x10xf32> to vector<4x10x10xf32>
    %91 = arith.addf %88, %90 : vector<4x10x10xf32>
    %cst_21 = arith.constant dense<0xFF800000> : vector<4x10xf32>
    %92 = vector.multi_reduction <maximumf>, %91, %cst_21 [2] : vector<4x10x10xf32> to vector<4x10xf32>
    %93 = vector.shape_cast %92 : vector<4x10xf32> to vector<4x10x1xf32>
    %94 = vector.broadcast %93 : vector<4x10x1xf32> to vector<4x10x10xf32>
    %95 = arith.subf %91, %94 : vector<4x10x10xf32>
    %96 = math.exp %95 : vector<4x10x10xf32>
    %cst_22 = arith.constant dense<0.000000e+00> : vector<4x10xf32>
    %97 = vector.multi_reduction <add>, %96, %cst_22 [2] : vector<4x10x10xf32> to vector<4x10xf32>
    %98 = vector.shape_cast %97 : vector<4x10xf32> to vector<4x10x1xf32>
    %99 = tpu.reciprocal %98 {approx = true} : vector<4x10x1xf32> -> vector<4x10x1xf32>
    %100 = vector.broadcast %99 : vector<4x10x1xf32> to vector<4x10x10xf32>
    %101 = arith.mulf %96, %100 : vector<4x10x10xf32>
    %102 = arith.truncf %101 : vector<4x10x10xf32> to vector<4x10x10xbf16>
    "tpu.trace_start"() <{level = 10 : i32, message = "hqk,hkd->hqd"}> : () -> ()
    %cst_23 = arith.constant dense<0.000000e+00> : vector<4x10x8xf32>
    %103 = tpu.matmul %102, %87, %cst_23 {dimension_numbers = #tpu.dot_dimension_numbers<[2], [1], [1], [2], [0, 0, 0, 1, 1, 2], [0], [0]>} : vector<4x10x10xbf16>, vector<4x10x8xbf16>, vector<4x10x8xf32> -> vector<4x10x8xf32>
    "tpu.trace_stop"() : () -> ()
    %104 = vector.extract_strided_slice %103 {offsets = [0, 0, 0], sizes = [1, 10, 8], strides = [1, 1, 1]} : vector<4x10x8xf32> to vector<1x10x8xf32>
    %105 = vector.shape_cast %104 : vector<1x10x8xf32> to vector<10x8xf32>
    %106 = vector.extract_strided_slice %103 {offsets = [1, 0, 0], sizes = [1, 10, 8], strides = [1, 1, 1]} : vector<4x10x8xf32> to vector<1x10x8xf32>
    %107 = vector.shape_cast %106 : vector<1x10x8xf32> to vector<10x8xf32>
    %108 = vector.extract_strided_slice %103 {offsets = [2, 0, 0], sizes = [1, 10, 8], strides = [1, 1, 1]} : vector<4x10x8xf32> to vector<1x10x8xf32>
    %109 = vector.shape_cast %108 : vector<1x10x8xf32> to vector<10x8xf32>
    %110 = vector.extract_strided_slice %103 {offsets = [3, 0, 0], sizes = [1, 10, 8], strides = [1, 1, 1]} : vector<4x10x8xf32> to vector<1x10x8xf32>
    %111 = vector.shape_cast %110 : vector<1x10x8xf32> to vector<10x8xf32>
    %112 = tpu.concatenate %105, %107, %109, %111 in 1 : vector<10x8xf32>, vector<10x8xf32>, vector<10x8xf32>, vector<10x8xf32> -> vector<10x32xf32>
    %113 = arith.truncf %112 : vector<10x32xf32> to vector<10x32xbf16>
    %114 = arith.index_cast %c0_i32 : i32 to index
    %c0_24 = arith.constant 0 : index
    %c0_25 = arith.constant 0 : index
    %115 = vector.load %arg7[%114, %c0_24, %c0_25] : memref<2x32x32xbf16, #tpu.memory_space<vmem>>, vector<1x32x32xbf16>
    %116 = vector.shape_cast %115 : vector<1x32x32xbf16> to vector<32x32xbf16>
    %cst_26 = arith.constant dense<0.000000e+00> : vector<10x32xf32>
    %117 = tpu.matmul %113, %116, %cst_26 {dimension_numbers = #tpu.dot_dimension_numbers<[1], [0], [0], [1], [0, 0, 1, 1], [], []>} : vector<10x32xbf16>, vector<32x32xbf16>, vector<10x32xf32> -> vector<10x32xf32>
    %118 = vector.broadcast %19 : vector<1x32xf32> to vector<10x32xf32>
    %119 = arith.addf %117, %118 : vector<10x32xf32>
    %120 = arith.addf %13, %119 : vector<10x32xf32>
    %cst_27 = arith.constant dense<0.000000e+00> : vector<10xf32>
    %121 = vector.multi_reduction <add>, %120, %cst_27 [1] : vector<10x32xf32> to vector<10xf32>
    %122 = vector.shape_cast %121 : vector<10xf32> to vector<10x1xf32>
    %cst_28 = arith.constant 3.200000e+01 : f32
    %123 = vector.broadcast %cst_28 : f32 to vector<10x1xf32>
    %124 = arith.divf %122, %123 : vector<10x1xf32>
    %125 = vector.broadcast %124 : vector<10x1xf32> to vector<10x32xf32>
    %126 = arith.subf %120, %125 : vector<10x32xf32>
    %127 = arith.mulf %126, %126 : vector<10x32xf32>
    %cst_29 = arith.constant dense<0.000000e+00> : vector<10xf32>
    %128 = vector.multi_reduction <add>, %127, %cst_29 [1] : vector<10x32xf32> to vector<10xf32>
    %129 = vector.shape_cast %128 : vector<10xf32> to vector<10x1xf32>
    %cst_30 = arith.constant 3.200000e+01 : f32
    %130 = vector.broadcast %cst_30 : f32 to vector<10x1xf32>
    %131 = arith.divf %129, %130 : vector<10x1xf32>
    %132 = vector.broadcast %124 : vector<10x1xf32> to vector<10x32xf32>
    %133 = arith.subf %120, %132 : vector<10x32xf32>
    %cst_31 = arith.constant 9.99999996E-13 : f32
    %134 = vector.broadcast %cst_31 : f32 to vector<10x1xf32>
    %135 = arith.addf %131, %134 : vector<10x1xf32>
    %136 = math.rsqrt %135 : vector<10x1xf32>
    %137 = vector.broadcast %136 : vector<10x1xf32> to vector<10x32xf32>
    %138 = arith.mulf %133, %137 : vector<10x32xf32>
    %139 = vector.broadcast %20 : vector<1x32xf32> to vector<10x32xf32>
    %140 = arith.mulf %138, %139 : vector<10x32xf32>
    %141 = vector.broadcast %21 : vector<1x32xf32> to vector<10x32xf32>
    %142 = arith.addf %140, %141 : vector<10x32xf32>
    %143 = arith.truncf %142 : vector<10x32xf32> to vector<10x32xbf16>
    %144 = arith.index_cast %c0_i32 : i32 to index
    %c0_32 = arith.constant 0 : index
    %c0_33 = arith.constant 0 : index
    %145 = vector.load %arg8[%144, %c0_32, %c0_33] : memref<2x32x64xbf16, #tpu.memory_space<vmem>>, vector<1x32x64xbf16>
    %146 = vector.shape_cast %145 : vector<1x32x64xbf16> to vector<32x64xbf16>
    %cst_34 = arith.constant dense<0.000000e+00> : vector<10x64xf32>
    %147 = tpu.matmul %143, %146, %cst_34 {dimension_numbers = #tpu.dot_dimension_numbers<[1], [0], [0], [1], [0, 0, 1, 1], [], []>} : vector<10x32xbf16>, vector<32x64xbf16>, vector<10x64xf32> -> vector<10x64xf32>
    %148 = arith.index_cast %c0_i32 : i32 to index
    %c0_35 = arith.constant 0 : index
    %c0_36 = arith.constant 0 : index
    %149 = vector.load %arg9[%148, %c0_35, %c0_36] : memref<2x1x64xf32, #tpu.memory_space<vmem>>, vector<1x1x64xf32>
    %150 = vector.shape_cast %149 : vector<1x1x64xf32> to vector<1x64xf32>
    %151 = vector.broadcast %150 : vector<1x64xf32> to vector<10x64xf32>
    %152 = arith.addf %147, %151 : vector<10x64xf32>
    %cst_37 = arith.constant 5.000000e-01 : f32
    %153 = vector.broadcast %cst_37 : f32 to vector<10x64xf32>
    %154 = arith.mulf %153, %152 : vector<10x64xf32>
    %cst_38 = arith.constant 0.707106769 : f32
    %155 = vector.broadcast %cst_38 : f32 to vector<10x64xf32>
    %156 = arith.mulf %152, %155 : vector<10x64xf32>
    %157 = math.absf %156 : vector<10x64xf32>
    %cst_39 = arith.constant 0.327591091 : f32
    %158 = vector.broadcast %cst_39 : f32 to vector<10x64xf32>
    %159 = arith.mulf %158, %157 : vector<10x64xf32>
    %cst_40 = arith.constant 1.000000e+00 : f32
    %160 = vector.broadcast %cst_40 : f32 to vector<10x64xf32>
    %161 = arith.addf %160, %159 : vector<10x64xf32>
    %cst_41 = arith.constant 1.000000e+00 : f32
    %162 = vector.broadcast %cst_41 : f32 to vector<10x64xf32>
    %163 = arith.divf %162, %161 : vector<10x64xf32>
    %cst_42 = arith.constant 1.06140542 : f32
    %164 = vector.broadcast %cst_42 : f32 to vector<10x64xf32>
    %165 = arith.mulf %164, %163 : vector<10x64xf32>
    %cst_43 = arith.constant -1.45315206 : f32
    %166 = vector.broadcast %cst_43 : f32 to vector<10x64xf32>
    %167 = arith.addf %165, %166 : vector<10x64xf32>
    %168 = arith.mulf %167, %163 : vector<10x64xf32>
    %cst_44 = arith.constant 1.42141378 : f32
    %169 = vector.broadcast %cst_44 : f32 to vector<10x64xf32>
    %170 = arith.addf %168, %169 : vector<10x64xf32>
    %171 = arith.mulf %170, %163 : vector<10x64xf32>
    %cst_45 = arith.constant -0.284496725 : f32
    %172 = vector.broadcast %cst_45 : f32 to vector<10x64xf32>
    %173 = arith.addf %171, %172 : vector<10x64xf32>
    %174 = arith.mulf %173, %163 : vector<10x64xf32>
    %cst_46 = arith.constant 0.254829586 : f32
    %175 = vector.broadcast %cst_46 : f32 to vector<10x64xf32>
    %176 = arith.addf %174, %175 : vector<10x64xf32>
    %177 = arith.mulf %176, %163 : vector<10x64xf32>
    %cst_47 = arith.constant 0.000000e+00 : f32
    %178 = vector.broadcast %cst_47 : f32 to vector<10x64xf32>
    %179 = arith.subf %178, %157 : vector<10x64xf32>
    %180 = arith.mulf %179, %157 : vector<10x64xf32>
    %181 = math.exp %180 : vector<10x64xf32>
    %182 = arith.mulf %177, %181 : vector<10x64xf32>
    %cst_48 = arith.constant 1.000000e+00 : f32
    %183 = vector.broadcast %cst_48 : f32 to vector<10x64xf32>
    %184 = arith.subf %183, %182 : vector<10x64xf32>
    %cst_49 = arith.constant 0.000000e+00 : f32
    %185 = vector.broadcast %cst_49 : f32 to vector<10x64xf32>
    %186 = arith.cmpf oge, %156, %185 : vector<10x64xf32>
    %cst_50 = arith.constant 0.000000e+00 : f32
    %187 = vector.broadcast %cst_50 : f32 to vector<10x64xf32>
    %188 = arith.subf %187, %184 : vector<10x64xf32>
    %189 = arith.select %186, %184, %188 : vector<10x64xi1>, vector<10x64xf32>
    %cst_51 = arith.constant 1.000000e+00 : f32
    %190 = vector.broadcast %cst_51 : f32 to vector<10x64xf32>
    %191 = arith.addf %190, %189 : vector<10x64xf32>
    %192 = arith.mulf %154, %191 : vector<10x64xf32>
    %193 = arith.truncf %192 : vector<10x64xf32> to vector<10x64xbf16>
    %194 = arith.index_cast %c0_i32 : i32 to index
    %c0_52 = arith.constant 0 : index
    %c0_53 = arith.constant 0 : index
    %195 = vector.load %arg10[%194, %c0_52, %c0_53] : memref<2x64x32xbf16, #tpu.memory_space<vmem>>, vector<1x64x32xbf16>
    %196 = vector.shape_cast %195 : vector<1x64x32xbf16> to vector<64x32xbf16>
    %cst_54 = arith.constant dense<0.000000e+00> : vector<10x32xf32>
    %197 = tpu.matmul %193, %196, %cst_54 {dimension_numbers = #tpu.dot_dimension_numbers<[1], [0], [0], [1], [0, 0, 1, 1], [], []>} : vector<10x64xbf16>, vector<64x32xbf16>, vector<10x32xf32> -> vector<10x32xf32>
    %198 = vector.broadcast %22 : vector<1x32xf32> to vector<10x32xf32>
    %199 = arith.addf %197, %198 : vector<10x32xf32>
    %200 = arith.addf %120, %199 : vector<10x32xf32>
    %c1_i32 = arith.constant 1 : i32
    %201 = arith.index_cast %c1_i32 : i32 to index
    %c0_55 = arith.constant 0 : index
    %c0_56 = arith.constant 0 : index
    %202 = vector.load %arg11[%201, %c0_55, %c0_56] : memref<2x6x32xf32, #tpu.memory_space<vmem>>, vector<1x6x32xf32>
    %203 = vector.shape_cast %202 : vector<1x6x32xf32> to vector<6x32xf32>
    %204 = vector.extract_strided_slice %203 {offsets = [0, 0], sizes = [1, 32], strides = [1, 1]} : vector<6x32xf32> to vector<1x32xf32>
    %205 = vector.extract_strided_slice %203 {offsets = [1, 0], sizes = [1, 32], strides = [1, 1]} : vector<6x32xf32> to vector<1x32xf32>
    %206 = vector.extract_strided_slice %203 {offsets = [2, 0], sizes = [1, 32], strides = [1, 1]} : vector<6x32xf32> to vector<1x32xf32>
    %207 = vector.extract_strided_slice %203 {offsets = [3, 0], sizes = [1, 32], strides = [1, 1]} : vector<6x32xf32> to vector<1x32xf32>
    %208 = vector.extract_strided_slice %203 {offsets = [4, 0], sizes = [1, 32], strides = [1, 1]} : vector<6x32xf32> to vector<1x32xf32>
    %209 = vector.extract_strided_slice %203 {offsets = [5, 0], sizes = [1, 32], strides = [1, 1]} : vector<6x32xf32> to vector<1x32xf32>
    %cst_57 = arith.constant dense<0.000000e+00> : vector<10xf32>
    %210 = vector.multi_reduction <add>, %200, %cst_57 [1] : vector<10x32xf32> to vector<10xf32>
    %211 = vector.shape_cast %210 : vector<10xf32> to vector<10x1xf32>
    %cst_58 = arith.constant 3.200000e+01 : f32
    %212 = vector.broadcast %cst_58 : f32 to vector<10x1xf32>
    %213 = arith.divf %211, %212 : vector<10x1xf32>
    %214 = vector.broadcast %213 : vector<10x1xf32> to vector<10x32xf32>
    %215 = arith.subf %200, %214 : vector<10x32xf32>
    %216 = arith.mulf %215, %215 : vector<10x32xf32>
    %cst_59 = arith.constant dense<0.000000e+00> : vector<10xf32>
    %217 = vector.multi_reduction <add>, %216, %cst_59 [1] : vector<10x32xf32> to vector<10xf32>
    %218 = vector.shape_cast %217 : vector<10xf32> to vector<10x1xf32>
    %cst_60 = arith.constant 3.200000e+01 : f32
    %219 = vector.broadcast %cst_60 : f32 to vector<10x1xf32>
    %220 = arith.divf %218, %219 : vector<10x1xf32>
    %221 = vector.broadcast %213 : vector<10x1xf32> to vector<10x32xf32>
    %222 = arith.subf %200, %221 : vector<10x32xf32>
    %cst_61 = arith.constant 9.99999996E-13 : f32
    %223 = vector.broadcast %cst_61 : f32 to vector<10x1xf32>
    %224 = arith.addf %220, %223 : vector<10x1xf32>
    %225 = math.rsqrt %224 : vector<10x1xf32>
    %226 = vector.broadcast %225 : vector<10x1xf32> to vector<10x32xf32>
    %227 = arith.mulf %222, %226 : vector<10x32xf32>
    %228 = vector.broadcast %204 : vector<1x32xf32> to vector<10x32xf32>
    %229 = arith.mulf %227, %228 : vector<10x32xf32>
    %230 = vector.broadcast %205 : vector<1x32xf32> to vector<10x32xf32>
    %231 = arith.addf %229, %230 : vector<10x32xf32>
    %232 = arith.truncf %231 : vector<10x32xf32> to vector<10x32xbf16>
    %233 = arith.index_cast %c1_i32 : i32 to index
    %c0_62 = arith.constant 0 : index
    %c0_63 = arith.constant 0 : index
    %234 = vector.load %arg5[%233, %c0_62, %c0_63] : memref<2x32x96xbf16, #tpu.memory_space<vmem>>, vector<1x32x96xbf16>
    %235 = vector.shape_cast %234 : vector<1x32x96xbf16> to vector<32x96xbf16>
    %cst_64 = arith.constant dense<0.000000e+00> : vector<10x96xf32>
    %236 = tpu.matmul %232, %235, %cst_64 {dimension_numbers = #tpu.dot_dimension_numbers<[1], [0], [0], [1], [0, 0, 1, 1], [], []>} : vector<10x32xbf16>, vector<32x96xbf16>, vector<10x96xf32> -> vector<10x96xf32>
    %237 = arith.index_cast %c1_i32 : i32 to index
    %c0_65 = arith.constant 0 : index
    %c0_66 = arith.constant 0 : index
    %238 = vector.load %arg6[%237, %c0_65, %c0_66] : memref<2x1x96xf32, #tpu.memory_space<vmem>>, vector<1x1x96xf32>
    %239 = vector.shape_cast %238 : vector<1x1x96xf32> to vector<1x96xf32>
    %240 = vector.broadcast %239 : vector<1x96xf32> to vector<10x96xf32>
    %241 = arith.addf %236, %240 : vector<10x96xf32>
    %242 = vector.extract_strided_slice %241 {offsets = [0, 0], sizes = [10, 32], strides = [1, 1]} : vector<10x96xf32> to vector<10x32xf32>
    %243 = vector.extract_strided_slice %242 {offsets = [0, 0], sizes = [10, 8], strides = [1, 1]} : vector<10x32xf32> to vector<10x8xf32>
    %244 = vector.extract_strided_slice %242 {offsets = [0, 8], sizes = [10, 8], strides = [1, 1]} : vector<10x32xf32> to vector<10x8xf32>
    %245 = vector.extract_strided_slice %242 {offsets = [0, 16], sizes = [10, 8], strides = [1, 1]} : vector<10x32xf32> to vector<10x8xf32>
    %246 = vector.extract_strided_slice %242 {offsets = [0, 24], sizes = [10, 8], strides = [1, 1]} : vector<10x32xf32> to vector<10x8xf32>
    %247 = vector.shape_cast %243 : vector<10x8xf32> to vector<1x10x8xf32>
    %248 = vector.shape_cast %244 : vector<10x8xf32> to vector<1x10x8xf32>
    %249 = vector.shape_cast %245 : vector<10x8xf32> to vector<1x10x8xf32>
    %250 = vector.shape_cast %246 : vector<10x8xf32> to vector<1x10x8xf32>
    %251 = tpu.concatenate %247, %248, %249, %250 in 0 : vector<1x10x8xf32>, vector<1x10x8xf32>, vector<1x10x8xf32>, vector<1x10x8xf32> -> vector<4x10x8xf32>
    %252 = arith.truncf %251 : vector<4x10x8xf32> to vector<4x10x8xbf16>
    %253 = vector.extract_strided_slice %241 {offsets = [0, 32], sizes = [10, 32], strides = [1, 1]} : vector<10x96xf32> to vector<10x32xf32>
    %254 = vector.extract_strided_slice %253 {offsets = [0, 0], sizes = [10, 8], strides = [1, 1]} : vector<10x32xf32> to vector<10x8xf32>
    %255 = vector.extract_strided_slice %253 {offsets = [0, 8], sizes = [10, 8], strides = [1, 1]} : vector<10x32xf32> to vector<10x8xf32>
    %256 = vector.extract_strided_slice %253 {offsets = [0, 16], sizes = [10, 8], strides = [1, 1]} : vector<10x32xf32> to vector<10x8xf32>
    %257 = vector.extract_strided_slice %253 {offsets = [0, 24], sizes = [10, 8], strides = [1, 1]} : vector<10x32xf32> to vector<10x8xf32>
    %258 = vector.shape_cast %254 : vector<10x8xf32> to vector<1x10x8xf32>
    %259 = vector.shape_cast %255 : vector<10x8xf32> to vector<1x10x8xf32>
    %260 = vector.shape_cast %256 : vector<10x8xf32> to vector<1x10x8xf32>
    %261 = vector.shape_cast %257 : vector<10x8xf32> to vector<1x10x8xf32>
    %262 = tpu.concatenate %258, %259, %260, %261 in 0 : vector<1x10x8xf32>, vector<1x10x8xf32>, vector<1x10x8xf32>, vector<1x10x8xf32> -> vector<4x10x8xf32>
    %263 = arith.truncf %262 : vector<4x10x8xf32> to vector<4x10x8xbf16>
    %264 = vector.extract_strided_slice %241 {offsets = [0, 64], sizes = [10, 32], strides = [1, 1]} : vector<10x96xf32> to vector<10x32xf32>
    %265 = vector.extract_strided_slice %264 {offsets = [0, 0], sizes = [10, 8], strides = [1, 1]} : vector<10x32xf32> to vector<10x8xf32>
    %266 = vector.extract_strided_slice %264 {offsets = [0, 8], sizes = [10, 8], strides = [1, 1]} : vector<10x32xf32> to vector<10x8xf32>
    %267 = vector.extract_strided_slice %264 {offsets = [0, 16], sizes = [10, 8], strides = [1, 1]} : vector<10x32xf32> to vector<10x8xf32>
    %268 = vector.extract_strided_slice %264 {offsets = [0, 24], sizes = [10, 8], strides = [1, 1]} : vector<10x32xf32> to vector<10x8xf32>
    %269 = vector.shape_cast %265 : vector<10x8xf32> to vector<1x10x8xf32>
    %270 = vector.shape_cast %266 : vector<10x8xf32> to vector<1x10x8xf32>
    %271 = vector.shape_cast %267 : vector<10x8xf32> to vector<1x10x8xf32>
    %272 = vector.shape_cast %268 : vector<10x8xf32> to vector<1x10x8xf32>
    %273 = tpu.concatenate %269, %270, %271, %272 in 0 : vector<1x10x8xf32>, vector<1x10x8xf32>, vector<1x10x8xf32>, vector<1x10x8xf32> -> vector<4x10x8xf32>
    %274 = arith.truncf %273 : vector<4x10x8xf32> to vector<4x10x8xbf16>
    "tpu.trace_start"() <{level = 10 : i32, message = "hqd,hkd->hqk"}> : () -> ()
    %cst_67 = arith.constant dense<0.000000e+00> : vector<4x10x10xf32>
    %275 = tpu.matmul %252, %263, %cst_67 {dimension_numbers = #tpu.dot_dimension_numbers<[2], [2], [1], [1], [0, 0, 0, 1, 1, 1], [0], [0]>} : vector<4x10x8xbf16>, vector<4x10x8xbf16>, vector<4x10x10xf32> -> vector<4x10x10xf32>
    "tpu.trace_stop"() : () -> ()
    %276 = vector.shape_cast %4 : vector<10x10xf32> to vector<1x10x10xf32>
    %277 = vector.broadcast %276 : vector<1x10x10xf32> to vector<4x10x10xf32>
    %278 = arith.addf %275, %277 : vector<4x10x10xf32>
    %cst_68 = arith.constant dense<0xFF800000> : vector<4x10xf32>
    %279 = vector.multi_reduction <maximumf>, %278, %cst_68 [2] : vector<4x10x10xf32> to vector<4x10xf32>
    %280 = vector.shape_cast %279 : vector<4x10xf32> to vector<4x10x1xf32>
    %281 = vector.broadcast %280 : vector<4x10x1xf32> to vector<4x10x10xf32>
    %282 = arith.subf %278, %281 : vector<4x10x10xf32>
    %283 = math.exp %282 : vector<4x10x10xf32>
    %cst_69 = arith.constant dense<0.000000e+00> : vector<4x10xf32>
    %284 = vector.multi_reduction <add>, %283, %cst_69 [2] : vector<4x10x10xf32> to vector<4x10xf32>
    %285 = vector.shape_cast %284 : vector<4x10xf32> to vector<4x10x1xf32>
    %286 = tpu.reciprocal %285 {approx = true} : vector<4x10x1xf32> -> vector<4x10x1xf32>
    %287 = vector.broadcast %286 : vector<4x10x1xf32> to vector<4x10x10xf32>
    %288 = arith.mulf %283, %287 : vector<4x10x10xf32>
    %289 = arith.truncf %288 : vector<4x10x10xf32> to vector<4x10x10xbf16>
    "tpu.trace_start"() <{level = 10 : i32, message = "hqk,hkd->hqd"}> : () -> ()
    %cst_70 = arith.constant dense<0.000000e+00> : vector<4x10x8xf32>
    %290 = tpu.matmul %289, %274, %cst_70 {dimension_numbers = #tpu.dot_dimension_numbers<[2], [1], [1], [2], [0, 0, 0, 1, 1, 2], [0], [0]>} : vector<4x10x10xbf16>, vector<4x10x8xbf16>, vector<4x10x8xf32> -> vector<4x10x8xf32>
    "tpu.trace_stop"() : () -> ()
    %291 = vector.extract_strided_slice %290 {offsets = [0, 0, 0], sizes = [1, 10, 8], strides = [1, 1, 1]} : vector<4x10x8xf32> to vector<1x10x8xf32>
    %292 = vector.shape_cast %291 : vector<1x10x8xf32> to vector<10x8xf32>
    %293 = vector.extract_strided_slice %290 {offsets = [1, 0, 0], sizes = [1, 10, 8], strides = [1, 1, 1]} : vector<4x10x8xf32> to vector<1x10x8xf32>
    %294 = vector.shape_cast %293 : vector<1x10x8xf32> to vector<10x8xf32>
    %295 = vector.extract_strided_slice %290 {offsets = [2, 0, 0], sizes = [1, 10, 8], strides = [1, 1, 1]} : vector<4x10x8xf32> to vector<1x10x8xf32>
    %296 = vector.shape_cast %295 : vector<1x10x8xf32> to vector<10x8xf32>
    %297 = vector.extract_strided_slice %290 {offsets = [3, 0, 0], sizes = [1, 10, 8], strides = [1, 1, 1]} : vector<4x10x8xf32> to vector<1x10x8xf32>
    %298 = vector.shape_cast %297 : vector<1x10x8xf32> to vector<10x8xf32>
    %299 = tpu.concatenate %292, %294, %296, %298 in 1 : vector<10x8xf32>, vector<10x8xf32>, vector<10x8xf32>, vector<10x8xf32> -> vector<10x32xf32>
    %300 = arith.truncf %299 : vector<10x32xf32> to vector<10x32xbf16>
    %301 = arith.index_cast %c1_i32 : i32 to index
    %c0_71 = arith.constant 0 : index
    %c0_72 = arith.constant 0 : index
    %302 = vector.load %arg7[%301, %c0_71, %c0_72] : memref<2x32x32xbf16, #tpu.memory_space<vmem>>, vector<1x32x32xbf16>
    %303 = vector.shape_cast %302 : vector<1x32x32xbf16> to vector<32x32xbf16>
    %cst_73 = arith.constant dense<0.000000e+00> : vector<10x32xf32>
    %304 = tpu.matmul %300, %303, %cst_73 {dimension_numbers = #tpu.dot_dimension_numbers<[1], [0], [0], [1], [0, 0, 1, 1], [], []>} : vector<10x32xbf16>, vector<32x32xbf16>, vector<10x32xf32> -> vector<10x32xf32>
    %305 = vector.broadcast %206 : vector<1x32xf32> to vector<10x32xf32>
    %306 = arith.addf %304, %305 : vector<10x32xf32>
    %307 = arith.addf %200, %306 : vector<10x32xf32>
    %cst_74 = arith.constant dense<0.000000e+00> : vector<10xf32>
    %308 = vector.multi_reduction <add>, %307, %cst_74 [1] : vector<10x32xf32> to vector<10xf32>
    %309 = vector.shape_cast %308 : vector<10xf32> to vector<10x1xf32>
    %cst_75 = arith.constant 3.200000e+01 : f32
    %310 = vector.broadcast %cst_75 : f32 to vector<10x1xf32>
    %311 = arith.divf %309, %310 : vector<10x1xf32>
    %312 = vector.broadcast %311 : vector<10x1xf32> to vector<10x32xf32>
    %313 = arith.subf %307, %312 : vector<10x32xf32>
    %314 = arith.mulf %313, %313 : vector<10x32xf32>
    %cst_76 = arith.constant dense<0.000000e+00> : vector<10xf32>
    %315 = vector.multi_reduction <add>, %314, %cst_76 [1] : vector<10x32xf32> to vector<10xf32>
    %316 = vector.shape_cast %315 : vector<10xf32> to vector<10x1xf32>
    %cst_77 = arith.constant 3.200000e+01 : f32
    %317 = vector.broadcast %cst_77 : f32 to vector<10x1xf32>
    %318 = arith.divf %316, %317 : vector<10x1xf32>
    %319 = vector.broadcast %311 : vector<10x1xf32> to vector<10x32xf32>
    %320 = arith.subf %307, %319 : vector<10x32xf32>
    %cst_78 = arith.constant 9.99999996E-13 : f32
    %321 = vector.broadcast %cst_78 : f32 to vector<10x1xf32>
    %322 = arith.addf %318, %321 : vector<10x1xf32>
    %323 = math.rsqrt %322 : vector<10x1xf32>
    %324 = vector.broadcast %323 : vector<10x1xf32> to vector<10x32xf32>
    %325 = arith.mulf %320, %324 : vector<10x32xf32>
    %326 = vector.broadcast %207 : vector<1x32xf32> to vector<10x32xf32>
    %327 = arith.mulf %325, %326 : vector<10x32xf32>
    %328 = vector.broadcast %208 : vector<1x32xf32> to vector<10x32xf32>
    %329 = arith.addf %327, %328 : vector<10x32xf32>
    %330 = arith.truncf %329 : vector<10x32xf32> to vector<10x32xbf16>
    %331 = arith.index_cast %c1_i32 : i32 to index
    %c0_79 = arith.constant 0 : index
    %c0_80 = arith.constant 0 : index
    %332 = vector.load %arg8[%331, %c0_79, %c0_80] : memref<2x32x64xbf16, #tpu.memory_space<vmem>>, vector<1x32x64xbf16>
    %333 = vector.shape_cast %332 : vector<1x32x64xbf16> to vector<32x64xbf16>
    %cst_81 = arith.constant dense<0.000000e+00> : vector<10x64xf32>
    %334 = tpu.matmul %330, %333, %cst_81 {dimension_numbers = #tpu.dot_dimension_numbers<[1], [0], [0], [1], [0, 0, 1, 1], [], []>} : vector<10x32xbf16>, vector<32x64xbf16>, vector<10x64xf32> -> vector<10x64xf32>
    %335 = arith.index_cast %c1_i32 : i32 to index
    %c0_82 = arith.constant 0 : index
    %c0_83 = arith.constant 0 : index
    %336 = vector.load %arg9[%335, %c0_82, %c0_83] : memref<2x1x64xf32, #tpu.memory_space<vmem>>, vector<1x1x64xf32>
    %337 = vector.shape_cast %336 : vector<1x1x64xf32> to vector<1x64xf32>
    %338 = vector.broadcast %337 : vector<1x64xf32> to vector<10x64xf32>
    %339 = arith.addf %334, %338 : vector<10x64xf32>
    %cst_84 = arith.constant 5.000000e-01 : f32
    %340 = vector.broadcast %cst_84 : f32 to vector<10x64xf32>
    %341 = arith.mulf %340, %339 : vector<10x64xf32>
    %cst_85 = arith.constant 0.707106769 : f32
    %342 = vector.broadcast %cst_85 : f32 to vector<10x64xf32>
    %343 = arith.mulf %339, %342 : vector<10x64xf32>
    %344 = math.absf %343 : vector<10x64xf32>
    %cst_86 = arith.constant 0.327591091 : f32
    %345 = vector.broadcast %cst_86 : f32 to vector<10x64xf32>
    %346 = arith.mulf %345, %344 : vector<10x64xf32>
    %cst_87 = arith.constant 1.000000e+00 : f32
    %347 = vector.broadcast %cst_87 : f32 to vector<10x64xf32>
    %348 = arith.addf %347, %346 : vector<10x64xf32>
    %cst_88 = arith.constant 1.000000e+00 : f32
    %349 = vector.broadcast %cst_88 : f32 to vector<10x64xf32>
    %350 = arith.divf %349, %348 : vector<10x64xf32>
    %cst_89 = arith.constant 1.06140542 : f32
    %351 = vector.broadcast %cst_89 : f32 to vector<10x64xf32>
    %352 = arith.mulf %351, %350 : vector<10x64xf32>
    %cst_90 = arith.constant -1.45315206 : f32
    %353 = vector.broadcast %cst_90 : f32 to vector<10x64xf32>
    %354 = arith.addf %352, %353 : vector<10x64xf32>
    %355 = arith.mulf %354, %350 : vector<10x64xf32>
    %cst_91 = arith.constant 1.42141378 : f32
    %356 = vector.broadcast %cst_91 : f32 to vector<10x64xf32>
    %357 = arith.addf %355, %356 : vector<10x64xf32>
    %358 = arith.mulf %357, %350 : vector<10x64xf32>
    %cst_92 = arith.constant -0.284496725 : f32
    %359 = vector.broadcast %cst_92 : f32 to vector<10x64xf32>
    %360 = arith.addf %358, %359 : vector<10x64xf32>
    %361 = arith.mulf %360, %350 : vector<10x64xf32>
    %cst_93 = arith.constant 0.254829586 : f32
    %362 = vector.broadcast %cst_93 : f32 to vector<10x64xf32>
    %363 = arith.addf %361, %362 : vector<10x64xf32>
    %364 = arith.mulf %363, %350 : vector<10x64xf32>
    %cst_94 = arith.constant 0.000000e+00 : f32
    %365 = vector.broadcast %cst_94 : f32 to vector<10x64xf32>
    %366 = arith.subf %365, %344 : vector<10x64xf32>
    %367 = arith.mulf %366, %344 : vector<10x64xf32>
    %368 = math.exp %367 : vector<10x64xf32>
    %369 = arith.mulf %364, %368 : vector<10x64xf32>
    %cst_95 = arith.constant 1.000000e+00 : f32
    %370 = vector.broadcast %cst_95 : f32 to vector<10x64xf32>
    %371 = arith.subf %370, %369 : vector<10x64xf32>
    %cst_96 = arith.constant 0.000000e+00 : f32
    %372 = vector.broadcast %cst_96 : f32 to vector<10x64xf32>
    %373 = arith.cmpf oge, %343, %372 : vector<10x64xf32>
    %cst_97 = arith.constant 0.000000e+00 : f32
    %374 = vector.broadcast %cst_97 : f32 to vector<10x64xf32>
    %375 = arith.subf %374, %371 : vector<10x64xf32>
    %376 = arith.select %373, %371, %375 : vector<10x64xi1>, vector<10x64xf32>
    %cst_98 = arith.constant 1.000000e+00 : f32
    %377 = vector.broadcast %cst_98 : f32 to vector<10x64xf32>
    %378 = arith.addf %377, %376 : vector<10x64xf32>
    %379 = arith.mulf %341, %378 : vector<10x64xf32>
    %380 = arith.truncf %379 : vector<10x64xf32> to vector<10x64xbf16>
    %381 = arith.index_cast %c1_i32 : i32 to index
    %c0_99 = arith.constant 0 : index
    %c0_100 = arith.constant 0 : index
    %382 = vector.load %arg10[%381, %c0_99, %c0_100] : memref<2x64x32xbf16, #tpu.memory_space<vmem>>, vector<1x64x32xbf16>
    %383 = vector.shape_cast %382 : vector<1x64x32xbf16> to vector<64x32xbf16>
    %cst_101 = arith.constant dense<0.000000e+00> : vector<10x32xf32>
    %384 = tpu.matmul %380, %383, %cst_101 {dimension_numbers = #tpu.dot_dimension_numbers<[1], [0], [0], [1], [0, 0, 1, 1], [], []>} : vector<10x64xbf16>, vector<64x32xbf16>, vector<10x32xf32> -> vector<10x32xf32>
    %385 = vector.broadcast %209 : vector<1x32xf32> to vector<10x32xf32>
    %386 = arith.addf %384, %385 : vector<10x32xf32>
    %387 = arith.addf %307, %386 : vector<10x32xf32>
    %c2_i32 = arith.constant 2 : i32
    %cst_102 = arith.constant dense<0.000000e+00> : vector<10xf32>
    %388 = vector.multi_reduction <add>, %387, %cst_102 [1] : vector<10x32xf32> to vector<10xf32>
    %389 = vector.shape_cast %388 : vector<10xf32> to vector<10x1xf32>
    %cst_103 = arith.constant 3.200000e+01 : f32
    %390 = vector.broadcast %cst_103 : f32 to vector<10x1xf32>
    %391 = arith.divf %389, %390 : vector<10x1xf32>
    %392 = vector.broadcast %391 : vector<10x1xf32> to vector<10x32xf32>
    %393 = arith.subf %387, %392 : vector<10x32xf32>
    %394 = arith.mulf %393, %393 : vector<10x32xf32>
    %cst_104 = arith.constant dense<0.000000e+00> : vector<10xf32>
    %395 = vector.multi_reduction <add>, %394, %cst_104 [1] : vector<10x32xf32> to vector<10xf32>
    %396 = vector.shape_cast %395 : vector<10xf32> to vector<10x1xf32>
    %cst_105 = arith.constant 3.200000e+01 : f32
    %397 = vector.broadcast %cst_105 : f32 to vector<10x1xf32>
    %398 = arith.divf %396, %397 : vector<10x1xf32>
    %399 = vector.broadcast %391 : vector<10x1xf32> to vector<10x32xf32>
    %400 = arith.subf %387, %399 : vector<10x32xf32>
    %cst_106 = arith.constant 9.99999996E-13 : f32
    %401 = vector.broadcast %cst_106 : f32 to vector<10x1xf32>
    %402 = arith.addf %398, %401 : vector<10x1xf32>
    %403 = math.rsqrt %402 : vector<10x1xf32>
    %404 = vector.broadcast %403 : vector<10x1xf32> to vector<10x32xf32>
    %405 = arith.mulf %400, %404 : vector<10x32xf32>
    %406 = vector.broadcast %1 : vector<1x32xf32> to vector<10x32xf32>
    %407 = arith.mulf %405, %406 : vector<10x32xf32>
    %408 = vector.broadcast %2 : vector<1x32xf32> to vector<10x32xf32>
    %409 = arith.addf %407, %408 : vector<10x32xf32>
    %c0_107 = arith.constant 0 : index
    %c0_108 = arith.constant 0 : index
    %410 = vector.load %arg12[%c0_107, %c0_108] : memref<10x32xf32, #tpu.memory_space<vmem>>, vector<10x32xf32>
    tpu.vector_store %arg12[%c0_107, %c0_108], %409 {strides = array<i32>} : memref<10x32xf32, #tpu.memory_space<vmem>>, vector<10x32xf32>,
    return
  }
  func.func @transform_0(%arg0: i32) -> (i32, i32) {
    %c0_i32 = arith.constant 0 : i32
    %c0_i32_0 = arith.constant 0 : i32
    %c0_i32_1 = arith.constant 0 : i32
    return %c0_i32, %c0_i32_0 : i32, i32
  }
  func.func @transform_1(%arg0: i32) -> (i32, i32) {
    %c0_i32 = arith.constant 0 : i32
    %c0_i32_0 = arith.constant 0 : i32
    %c0_i32_1 = arith.constant 0 : i32
    return %c0_i32, %c0_i32_0 : i32, i32
  }
  func.func @transform_2(%arg0: i32) -> (i32, i32) {
    %c0_i32 = arith.constant 0 : i32
    %c0_i32_0 = arith.constant 0 : i32
    %c0_i32_1 = arith.constant 0 : i32
    return %c0_i32, %c0_i32_0 : i32, i32
  }
  func.func @transform_3(%arg0: i32) -> (i32, i32) {
    %c0_i32 = arith.constant 0 : i32
    %c0_i32_0 = arith.constant 0 : i32
    %c0_i32_1 = arith.constant 0 : i32
    return %c0_i32, %c0_i32_0 : i32, i32
  }
  func.func @transform_4(%arg0: i32) -> (i32, i32, i32) {
    %c0_i32 = arith.constant 0 : i32
    %c0_i32_0 = arith.constant 0 : i32
    %c0_i32_1 = arith.constant 0 : i32
    %c0_i32_2 = arith.constant 0 : i32
    return %c0_i32, %c0_i32_0, %c0_i32_1 : i32, i32, i32
  }
  func.func @transform_5(%arg0: i32) -> (i32, i32, i32) {
    %c0_i32 = arith.constant 0 : i32
    %c0_i32_0 = arith.constant 0 : i32
    %c0_i32_1 = arith.constant 0 : i32
    %c0_i32_2 = arith.constant 0 : i32
    return %c0_i32, %c0_i32_0, %c0_i32_1 : i32, i32, i32
  }
  func.func @transform_6(%arg0: i32) -> (i32, i32, i32) {
    %c0_i32 = arith.constant 0 : i32
    %c0_i32_0 = arith.constant 0 : i32
    %c0_i32_1 = arith.constant 0 : i32
    %c0_i32_2 = arith.constant 0 : i32
    return %c0_i32, %c0_i32_0, %c0_i32_1 : i32, i32, i32
  }
  func.func @transform_7(%arg0: i32) -> (i32, i32, i32) {
    %c0_i32 = arith.constant 0 : i32
    %c0_i32_0 = arith.constant 0 : i32
    %c0_i32_1 = arith.constant 0 : i32
    %c0_i32_2 = arith.constant 0 : i32
    return %c0_i32, %c0_i32_0, %c0_i32_1 : i32, i32, i32
  }
  func.func @transform_8(%arg0: i32) -> (i32, i32, i32) {
    %c0_i32 = arith.constant 0 : i32
    %c0_i32_0 = arith.constant 0 : i32
    %c0_i32_1 = arith.constant 0 : i32
    %c0_i32_2 = arith.constant 0 : i32
    return %c0_i32, %c0_i32_0, %c0_i32_1 : i32, i32, i32
  }
  func.func @transform_9(%arg0: i32) -> (i32, i32, i32) {
    %c0_i32 = arith.constant 0 : i32
    %c0_i32_0 = arith.constant 0 : i32
    %c0_i32_1 = arith.constant 0 : i32
    %c0_i32_2 = arith.constant 0 : i32
    return %c0_i32, %c0_i32_0, %c0_i32_1 : i32, i32, i32
  }
  func.func @transform_10(%arg0: i32) -> (i32, i32, i32) {
    %c0_i32 = arith.constant 0 : i32
    %c0_i32_0 = arith.constant 0 : i32
    %c0_i32_1 = arith.constant 0 : i32
    %c0_i32_2 = arith.constant 0 : i32
    return %c0_i32, %c0_i32_0, %c0_i32_1 : i32, i32, i32
  }
  func.func @transform_11(%arg0: i32) -> (i32, i32) {
    %c0_i32 = arith.constant 0 : i32
    %c0_i32_0 = arith.constant 0 : i32
    %c0_i32_1 = arith.constant 0 : i32
    return %c0_i32, %c0_i32_0 : i32, i32
  }
}

</mosaic_0001>

<llo_original>
// kernel: vit_forward.1
$region0: #{vit_forward.1}
  #allocation0 [shape = 'u32[]', space=smem, size = 0x4, offset = 0x4, fixed_abs, tag = 'smem constant byte address 0x4 - core index']
  #allocation1 [shape = 'u32[72,128]{1,0:T(1,128)}', space=vmem, size = 0x9000, scoped, tag = 'internal scratch']
  %s0 = inlined_call_operand.vmem [shape: f32[8,192], index: 0, kind: input, shape index: {}]
  %s1 = inlined_call_operand.vmem [shape: bf16[192,32], index: 1, kind: input, shape index: {}]
  %s2 = inlined_call_operand.vmem [shape: f32[12,32], index: 2, kind: input, shape index: {}]
  %s3 = inlined_call_operand.vmem [shape: f32[10,10], index: 3, kind: input, shape index: {}]
  %s4 = inlined_call_operand.vmem [shape: bf16[2,32,96], index: 4, kind: input, shape index: {}]
  %s5 = inlined_call_operand.vmem [shape: f32[2,1,96], index: 5, kind: input, shape index: {}]
  %s6 = inlined_call_operand.vmem [shape: bf16[2,32,32], index: 6, kind: input, shape index: {}]
  %s7 = inlined_call_operand.vmem [shape: bf16[2,32,64], index: 7, kind: input, shape index: {}]
  %s8 = inlined_call_operand.vmem [shape: f32[2,1,64], index: 8, kind: input, shape index: {}]
  %s9 = inlined_call_operand.vmem [shape: bf16[2,64,32], index: 9, kind: input, shape index: {}]
  %s10 = inlined_call_operand.vmem [shape: f32[2,6,32], index: 10, kind: input, shape index: {}]
  %s11 = inlined_call_operand.vmem [shape: f32[10,32], index: 11, kind: output, shape index: {}]
  %s12 = sld [smem:[#allocation0]]
  $region54: #{vit_forward.1} parent=0
    _
  %s14 = ssub.s32 1, %s12
  %s15 = scalar_select 0, %s14, %s12
  // Predicated region
  $region2: #{vit_forward.1} parent=0 // pred_check
    _
  $region3: #{vit_forward.1} parent=0 // pred_check_branch
    %17 = sbr.rel (0) target = $region5
  $region4: #{vit_forward.1} parent=0 // pred_region
    _
  $region5: #{vit_forward.1} parent=0 // pred_fallthru
    _
  // Predicated region
  $region6: #{vit_forward.1} parent=0 // pred_check
    _
  $region7: #{vit_forward.1} parent=0 // pred_check_branch
    %19 = sbr.rel (0) target = $region9
  $region8: #{vit_forward.1} parent=0 // pred_region
    _
  $region9: #{vit_forward.1} parent=0 // pred_fallthru
    _
  // Predicated region
  $region10: #{vit_forward.1} parent=0 // pred_check
    _
  $region11: #{vit_forward.1} parent=0 // pred_check_branch
    %21 = sbr.rel (0) target = $region13
  $region12: #{vit_forward.1} parent=0 // pred_region
    _
  $region13: #{vit_forward.1} parent=0 // pred_fallthru
    _
  // Predicated region
  $region14: #{vit_forward.1} parent=0 // pred_check
    _
  $region15: #{vit_forward.1} parent=0 // pred_check_branch
    %23 = sbr.rel (0) target = $region17
  $region16: #{vit_forward.1} parent=0 // pred_region
    _
  $region17: #{vit_forward.1} parent=0 // pred_fallthru
    _
  // Predicated region
  $region18: #{vit_forward.1} parent=0 // pred_check
    _
  $region19: #{vit_forward.1} parent=0 // pred_check_branch
    %25 = sbr.rel (0) target = $region21
  $region20: #{vit_forward.1} parent=0 // pred_region
    _
  $region21: #{vit_forward.1} parent=0 // pred_fallthru
    _
  // Predicated region
  $region22: #{vit_forward.1} parent=0 // pred_check
    _
  $region23: #{vit_forward.1} parent=0 // pred_check_branch
    %27 = sbr.rel (0) target = $region25
  $region24: #{vit_forward.1} parent=0 // pred_region
    _
  $region25: #{vit_forward.1} parent=0 // pred_fallthru
    _
  // Predicated region
  $region26: #{vit_forward.1} parent=0 // pred_check
    _
  $region27: #{vit_forward.1} parent=0 // pred_check_branch
    %29 = sbr.rel (0) target = $region29
  $region28: #{vit_forward.1} parent=0 // pred_region
    _
  $region29: #{vit_forward.1} parent=0 // pred_fallthru
    _
  // Predicated region
  $region30: #{vit_forward.1} parent=0 // pred_check
    _
  $region31: #{vit_forward.1} parent=0 // pred_check_branch
    %31 = sbr.rel (0) target = $region33
  $region32: #{vit_forward.1} parent=0 // pred_region
    _
  $region33: #{vit_forward.1} parent=0 // pred_fallthru
    _
  // Predicated region
  $region34: #{vit_forward.1} parent=0 // pred_check
    _
  $region35: #{vit_forward.1} parent=0 // pred_check_branch
    %33 = sbr.rel (0) target = $region37
  $region36: #{vit_forward.1} parent=0 // pred_region
    _
  $region37: #{vit_forward.1} parent=0 // pred_fallthru
    _
  // Predicated region
  $region38: #{vit_forward.1} parent=0 // pred_check
    _
  $region39: #{vit_forward.1} parent=0 // pred_check_branch
    %35 = sbr.rel (0) target = $region41
  $region40: #{vit_forward.1} parent=0 // pred_region
    _
  $region41: #{vit_forward.1} parent=0 // pred_fallthru
    _
  // Predicated region
  $region42: #{vit_forward.1} parent=0 // pred_check
    _
  $region43: #{vit_forward.1} parent=0 // pred_check_branch
    %37 = sbr.rel (0) target = $region45
  $region44: #{vit_forward.1} parent=0 // pred_region
    _
  $region45: #{vit_forward.1} parent=0 // pred_fallthru
    _
  %v39 = vld [vmem:[%s2] sm:$0xff]
  %v40 = vld [vmem:[%s2 + $0x8] sm:$0xf]
  %v41 = vld [vmem:[%s3] sm:$0xff]
  %v42 = vld [vmem:[%s3 + $0x8] sm:$0x3]
  %v43 = vld [vmem:[%s0] sm:$0xff]
  %v44 = vld [vmem:[%s0 + $0x8] sm:$0xff]
  %v45 = vpack.c.bf16 %v43, %v43
  %v46 = vpack.c.bf16 %v44, %v44
  %v47 = vld [vmem:[%s1] sm:$0xf]
  %v48 = vld [vmem:[%s1 + $0x4] sm:$0xf]
  %v49 = vld [vmem:[%s1 + $0x8] sm:$0xf]
  %v50 = vld [vmem:[%s1 + $0xc] sm:$0xf]
  %v51 = vld [vmem:[%s1 + $0x10] sm:$0xf]
  %v52 = vld [vmem:[%s1 + $0x14] sm:$0xf]
  %v53 = vld [vmem:[%s1 + $0x18] sm:$0xf]
  %v54 = vld [vmem:[%s1 + $0x1c] sm:$0xf]
  %v55 = vld [vmem:[%s1 + $0x20] sm:$0xf]
  %v56 = vld [vmem:[%s1 + $0x24] sm:$0xf]
  %v57 = vld [vmem:[%s1 + $0x28] sm:$0xf]
  %v58 = vld [vmem:[%s1 + $0x2c] sm:$0xf]
  %v59 = vld [vmem:[%s1 + $0x30] sm:$0xf]
  %v60 = vld [vmem:[%s1 + $0x34] sm:$0xf]
  %v61 = vld [vmem:[%s1 + $0x38] sm:$0xf]
  %v62 = vld [vmem:[%s1 + $0x3c] sm:$0xf]
  %v63 = vld [vmem:[%s1 + $0x40] sm:$0xf]
  %v64 = vld [vmem:[%s1 + $0x44] sm:$0xf]
  %v65 = vld [vmem:[%s1 + $0x48] sm:$0xf]
  %v66 = vld [vmem:[%s1 + $0x4c] sm:$0xf]
  %v67 = vld [vmem:[%s1 + $0x50] sm:$0xf]
  %v68 = vld [vmem:[%s1 + $0x54] sm:$0xf]
  %v69 = vld [vmem:[%s1 + $0x58] sm:$0xf]
  %v70 = vld [vmem:[%s1 + $0x5c] sm:$0xf]
  %v95 = vunpack.c.l.b16 %v47
  %v96 = vunpack.c.l.b16 %v48
  %v97 = vunpack.c.l.b16 %v49
  %v98 = vunpack.c.l.b16 %v50
  %v99 = vunpack.c.l.b16 %v51
  %v100 = vunpack.c.l.b16 %v52
  %v101 = vunpack.c.l.b16 %v53
  %v102 = vunpack.c.l.b16 %v54
  %v103 = vunpack.c.l.b16 %v55
  %v104 = vunpack.c.l.b16 %v56
  %v105 = vunpack.c.l.b16 %v57
  %v106 = vunpack.c.l.b16 %v58
  %v107 = vunpack.c.l.b16 %v59
  %v108 = vunpack.c.l.b16 %v60
  %v109 = vunpack.c.l.b16 %v61
  %v110 = vunpack.c.l.b16 %v62
  %v111 = vunpack.c.l.b16 %v63
  %v112 = vunpack.c.l.b16 %v64
  %v113 = vunpack.c.l.b16 %v65
  %v114 = vunpack.c.l.b16 %v66
  %v115 = vunpack.c.l.b16 %v67
  %v116 = vunpack.c.l.b16 %v68
  %v117 = vunpack.c.l.b16 %v69
  %v118 = vunpack.c.l.b16 %v70
  %v119 = vpack.c.b16 %v96, %v95
  %v120 = vpack.c.b16 %v98, %v97
  %v121 = vpack.c.b16 %v100, %v99
  %v122 = vpack.c.b16 %v102, %v101
  %v123 = vpack.c.b16 %v104, %v103
  %v124 = vpack.c.b16 %v106, %v105
  %v125 = vpack.c.b16 %v108, %v107
  %v126 = vpack.c.b16 %v110, %v109
  %v127 = vpack.c.b16 %v112, %v111
  %v128 = vpack.c.b16 %v114, %v113
  %v129 = vpack.c.b16 %v116, %v115
  %v130 = vpack.c.b16 %v118, %v117
  %vm143 = vcmask 523264
  %v145 = vsel %vm143, %v46, 0
  %147 = vmatpush.bf16.msra.mxu0 %v126
  %148 = vmatpush.bf16.msra.mxu0 %v125
  %149 = vmatpush.bf16.msra.mxu0 %v124
  %150 = vmatpush.bf16.msra.mxu0 %v123
  %151 = vmatpush.bf16.msra.mxu0 %v122
  %152 = vmatpush.bf16.msra.mxu0 %v121
  %153 = vmatpush.bf16.msra.mxu0 %v120
  %154 = vmatpush.bf16.msra.mxu0 %v119
  %155 = vmatmul.bf16.gmra.mxu0 %v45
  %v156 = vpop.f32.mrf.mxu0
  %v157 = vadd.f32 0.0, %v156
  %v158 = vpop.f32.mrf.mxu0
  %159 = vdwg.mxu0
  %160 = vmatpush.bf16.msra.mxu0 0
  %161 = vmatpush.bf16.msra.mxu0 0
  %162 = vmatpush.bf16.msra.mxu0 0
  %163 = vmatpush.bf16.msra.mxu0 0
  %164 = vmatpush.bf16.msra.mxu0 %v130
  %165 = vmatpush.bf16.msra.mxu0 %v129
  %166 = vmatpush.bf16.msra.mxu0 %v128
  %167 = vmatpush.bf16.msra.mxu0 %v127
  %168 = vmatmul.bf16.gmra.mxu0 %v145
  %v169 = vpop.f32.mrf.mxu0
  %v170 = vadd.f32 %v157, %v169
  %v171 = vpop.f32.mrf.mxu0
  %172 = vdwg.mxu0
  %v174 = vrot.slane %v170, 7
  %v176 = vrot.slane %v170, 6
  %vm178 = vcmask 1040384
  %v179 = vsel %vm178, 0.0, %v174
  %vm180 = vcmask 1044480
  %v181 = vsel %vm180, %v179, 0.0
  %vm182 = vcmask 1045504
  %v183 = vsel %vm182, %v181, %v176
  %v186 = vrot.slane %v39, 2
  %v187 = vrot.slane %v40, 2
  %v188 = vsel %vm182, %v186, %v187
  %v191 = vadd.f32 %v183, %v188
  %v192 = vadd.f32 %v176, %v187
  %v193 = vld [vmem:[%s10] sm:$0x3f]
  %vm194 = vcmask 261120
  %v195 = vsel %vm194, %v191, 0.0
  %196 = vadd.xlane.f32.xlu0 %v195
  %v197 = vpop.xlane.xlu0 %196
  %vm198 = vcmask 254976
  %v199 = vsel %vm198, %v192, 0.0
  %200 = vadd.xlane.f32.xlu0 %v199
  %v201 = vpop.xlane.xlu0 %200
  %v202 = vrcp.pop 32.0
  %v203 = vmul.f32 32.0, %v202
  %v204 = vsub.f32 1.0, %v203
  %v205 = vmul.f32 %v202, %v204
  %v206 = vadd.f32 %v202, %v205
  %vm207 = vweird.f32 %v202
  %v208 = vsel %vm207, %v202, %v206
  %v209 = vmul.f32 %v197, %v208
  %v210 = vmul.f32 %v201, %v208
  %v211 = vsub.f32 %v191, %v209
  %v212 = vsub.f32 %v192, %v210
  %v213 = vmul.f32 %v211, %v211
  %v214 = vmul.f32 %v212, %v212
  %v215 = vsel %vm194, %v213, 0.0
  %216 = vadd.xlane.f32.xlu0 %v215
  %v217 = vpop.xlane.xlu0 %216
  %v218 = vsel %vm198, %v214, 0.0
  %219 = vadd.xlane.f32.xlu0 %v218
  %v220 = vpop.xlane.xlu0 %219
  %v221 = vmul.f32 %v217, %v208
  %v222 = vmul.f32 %v220, %v208
  %v223 = vadd.f32 %v221, 1e-12
  %v224 = vadd.f32 %v222, 1e-12
  %v225 = vrsqrt.pop %v223
  %v226 = vmul.f32 %v225, %v223
  %v227 = vmul.f32 %v226, %v225
  %v228 = vmul.f32 0.5, %v227
  %v229 = vsub.f32 1.5, %v228
  %v230 = vmul.f32 %v225, %v229
  %vm231 = vweird.f32 %v223
  %vm232 = vweird.f32 %v225
  %vm233 = vmor %vm231, %vm232
  %v234 = vsel %vm233, %v225, %v230
  %v235 = vrsqrt.pop %v224
  %v236 = vmul.f32 %v235, %v224
  %v237 = vmul.f32 %v236, %v235
  %v238 = vmul.f32 0.5, %v237
  %v239 = vsub.f32 1.5, %v238
  %v240 = vmul.f32 %v235, %v239
  %vm241 = vweird.f32 %v224
  %vm242 = vweird.f32 %v235
  %vm243 = vmor %vm241, %vm242
  %v244 = vsel %vm243, %v235, %v240
  %v245 = vmul.f32 %v211, %v234
  %v246 = vmul.f32 %v212, %v244
  %v247 = vperm.slane %v193, 0
  %v248 = vmul.f32 %v245, %v247
  %v249 = vmul.f32 %v246, %v247
  %v250 = vperm.slane %v193, 1
  %v251 = vadd.f32 %v248, %v250
  %v252 = vadd.f32 %v249, %v250
  %v253 = vpack.c.bf16 %v252, %v251
  %v254 = vld [vmem:[%s4] sm:$0xf]
  %v255 = vld [vmem:[%s4 + $0x4] sm:$0xf]
  %v256 = vld [vmem:[%s4 + $0x8] sm:$0xf]
  %v257 = vld [vmem:[%s4 + $0xc] sm:$0xf]
  %v258 = vld [vmem:[%s5] sm:$0x1]
  %v260 = vperm.slane %v258, 0
  %v266 = vunpack.c.l.b16 %v254
  %v267 = vunpack.c.l.b16 %v255
  %v268 = vunpack.c.l.b16 %v256
  %v269 = vunpack.c.l.b16 %v257
  %v270 = vpack.c.b16 %v267, %v266
  %v271 = vpack.c.b16 %v269, %v268
  %v275 = vsel %vm194, %v253, 0
  %277 = vmatpush.bf16.msra.mxu0 0
  %278 = vmatpush.bf16.msra.mxu0 0
  %279 = vmatpush.bf16.msra.mxu0 0
  %280 = vmatpush.bf16.msra.mxu0 0
  %281 = vmatpush.bf16.msra.mxu0 0
  %282 = vmatpush.bf16.msra.mxu0 0
  %283 = vmatpush.bf16.msra.mxu0 %v271
  %284 = vmatpush.bf16.msra.mxu0 %v270
  %285 = vmatmul.bf16.gmra.mxu0 %v275
  %v286 = vpop.f32.mrf.mxu0
  %v287 = vadd.f32 %v260, %v286
  %v288 = vpop.f32.mrf.mxu0
  %v289 = vadd.f32 %v260, %v288
  %290 = vdwg.mxu0
  %293 = vrot.lane.b32.xlu0 %v287, 120
  %v294 = vpop.permute.xlu0 %293
  %295 = vrot.lane.b32.xlu0 %v289, 120
  %v296 = vpop.permute.xlu0 %295
  %299 = vrot.lane.b32.xlu0 %v287, 112
  %v300 = vpop.permute.xlu0 %299
  %301 = vrot.lane.b32.xlu0 %v289, 112
  %v302 = vpop.permute.xlu0 %301
  %305 = vrot.lane.b32.xlu0 %v287, 104
  %v306 = vpop.permute.xlu0 %305
  %307 = vrot.lane.b32.xlu0 %v289, 104
  %v308 = vpop.permute.xlu0 %307
  %v311 = vpack.c.bf16 %v287, %v287
  %v312 = vpack.c.bf16 %v289, %v289
  %v313 = vpack.c.bf16 %v294, %v294
  %v314 = vpack.c.bf16 %v296, %v296
  %v315 = vpack.c.bf16 %v300, %v300
  %v316 = vpack.c.bf16 %v302, %v302
  %v317 = vpack.c.bf16 %v306, %v306
  %v318 = vpack.c.bf16 %v308, %v308
  %v321 = vunpack.c.l.b16 %v311
  %v322 = vunpack.c.l.b16 %v312
  %v323 = vpack.c.b16 %v322, %v321
  %324 = vrot.lane.b32.xlu0 %v323, 96
  %v325 = vpop.permute.xlu0 %324
  %vm326 = vcmask 64512
  %v328 = vsel %vm326, %v323, 0
  %v331 = vsel %vm326, %v325, 0
  %333 = vmatpush.bf16.xpose.msra.mxu0 0
  %334 = vmatpush.bf16.xpose.msra.mxu0 0
  %335 = vmatpush.bf16.xpose.msra.mxu0 0
  %336 = vmatpush.bf16.xpose.msra.mxu0 0
  %337 = vmatpush.bf16.xpose.msra.mxu0 0
  %338 = vmatpush.bf16.xpose.msra.mxu0 0
  %339 = vmatpush.bf16.xpose.msra.mxu0 0
  %340 = vmatpush.bf16.xpose.msra.mxu0 %v331
  %341 = vmatmul.bf16.gmra.mxu0 %v328
  %v342 = vpop.f32.mrf.mxu0
  %v343 = vadd.f32 %v41, %v342
  %v344 = vpop.f32.mrf.mxu0
  %v345 = vadd.f32 %v42, %v344
  %346 = vdwg.mxu0
  %v349 = vunpack.c.l.b16 %v313
  %v350 = vunpack.c.l.b16 %v314
  %v351 = vpack.c.b16 %v350, %v349
  %352 = vrot.lane.b32.xlu0 %v351, 96
  %v353 = vpop.permute.xlu0 %352
  %v355 = vsel %vm326, %v351, 0
  %v358 = vsel %vm326, %v353, 0
  %360 = vmatpush.bf16.xpose.msra.mxu0 0
  %361 = vmatpush.bf16.xpose.msra.mxu0 0
  %362 = vmatpush.bf16.xpose.msra.mxu0 0
  %363 = vmatpush.bf16.xpose.msra.mxu0 0
  %364 = vmatpush.bf16.xpose.msra.mxu0 0
  %365 = vmatpush.bf16.xpose.msra.mxu0 0
  %366 = vmatpush.bf16.xpose.msra.mxu0 0
  %367 = vmatpush.bf16.xpose.msra.mxu0 %v358
  %368 = vmatmul.bf16.gmra.mxu0 %v355
  %v369 = vpop.f32.mrf.mxu0
  %v370 = vadd.f32 %v41, %v369
  %v371 = vpop.f32.mrf.mxu0
  %v372 = vadd.f32 %v42, %v371
  %373 = vdwg.mxu0
  %v376 = vunpack.c.l.b16 %v315
  %v377 = vunpack.c.l.b16 %v316
  %v378 = vpack.c.b16 %v377, %v376
  %379 = vrot.lane.b32.xlu0 %v378, 96
  %v380 = vpop.permute.xlu0 %379
  %v382 = vsel %vm326, %v378, 0
  %v385 = vsel %vm326, %v380, 0
  %387 = vmatpush.bf16.xpose.msra.mxu0 0
  %388 = vmatpush.bf16.xpose.msra.mxu0 0
  %389 = vmatpush.bf16.xpose.msra.mxu0 0
  %390 = vmatpush.bf16.xpose.msra.mxu0 0
  %391 = vmatpush.bf16.xpose.msra.mxu0 0
  %392 = vmatpush.bf16.xpose.msra.mxu0 0
  %393 = vmatpush.bf16.xpose.msra.mxu0 0
  %394 = vmatpush.bf16.xpose.msra.mxu0 %v385
  %395 = vmatmul.bf16.gmra.mxu0 %v382
  %v396 = vpop.f32.mrf.mxu0
  %v397 = vadd.f32 %v41, %v396
  %v398 = vpop.f32.mrf.mxu0
  %v399 = vadd.f32 %v42, %v398
  %400 = vdwg.mxu0
  %v403 = vunpack.c.l.b16 %v317
  %v404 = vunpack.c.l.b16 %v318
  %v405 = vpack.c.b16 %v404, %v403
  %406 = vrot.lane.b32.xlu0 %v405, 96
  %v407 = vpop.permute.xlu0 %406
  %v409 = vsel %vm326, %v405, 0
  %v412 = vsel %vm326, %v407, 0
  %414 = vmatpush.bf16.xpose.msra.mxu0 0
  %415 = vmatpush.bf16.xpose.msra.mxu0 0
  %416 = vmatpush.bf16.xpose.msra.mxu0 0
  %417 = vmatpush.bf16.xpose.msra.mxu0 0
  %418 = vmatpush.bf16.xpose.msra.mxu0 0
  %419 = vmatpush.bf16.xpose.msra.mxu0 0
  %420 = vmatpush.bf16.xpose.msra.mxu0 0
  %421 = vmatpush.bf16.xpose.msra.mxu0 %v412
  %422 = vmatmul.bf16.gmra.mxu0 %v409
  %v423 = vpop.f32.mrf.mxu0
  %v424 = vadd.f32 %v41, %v423
  %v425 = vpop.f32.mrf.mxu0
  %v426 = vadd.f32 %v42, %v425
  %427 = vdwg.mxu0
  %vm428 = vcmask 80896
  %v429 = vsel %vm428, %v343, -inf
  %430 = vmax.xlane.f32.xlu0 %v429
  %v431 = vpop.xlane.xlu0 %430
  %vm432 = vcmask 74752
  %v433 = vsel %vm432, %v345, -inf
  %434 = vmax.xlane.f32.xlu0 %v433
  %v435 = vpop.xlane.xlu0 %434
  %v436 = vsel %vm428, %v370, -inf
  %437 = vmax.xlane.f32.xlu0 %v436
  %v438 = vpop.xlane.xlu0 %437
  %v439 = vsel %vm432, %v372, -inf
  %440 = vmax.xlane.f32.xlu0 %v439
  %v441 = vpop.xlane.xlu0 %440
  %v442 = vsel %vm428, %v397, -inf
  %443 = vmax.xlane.f32.xlu0 %v442
  %v444 = vpop.xlane.xlu0 %443
  %v445 = vsel %vm432, %v399, -inf
  %446 = vmax.xlane.f32.xlu0 %v445
  %v447 = vpop.xlane.xlu0 %446
  %v448 = vsel %vm428, %v424, -inf
  %449 = vmax.xlane.f32.xlu0 %v448
  %v450 = vpop.xlane.xlu0 %449
  %v451 = vsel %vm432, %v426, -inf
  %452 = vmax.xlane.f32.xlu0 %v451
  %v453 = vpop.xlane.xlu0 %452
  %v454 = vsub.f32 %v343, %v431
  %v455 = vsub.f32 %v345, %v435
  %v456 = vsub.f32 %v370, %v438
  %v457 = vsub.f32 %v372, %v441
  %v458 = vsub.f32 %v397, %v444
  %v459 = vsub.f32 %v399, %v447
  %v460 = vsub.f32 %v424, %v450
  %v461 = vsub.f32 %v426, %v453
  %v462 = vmul.f32 %v454, 1.442695
  %v463 = vpow.pop %v462
  %v464 = vmul.f32 %v455, 1.442695
  %v465 = vpow.pop %v464
  %v466 = vmul.f32 %v456, 1.442695
  %v467 = vpow.pop %v466
  %v468 = vmul.f32 %v457, 1.442695
  %v469 = vpow.pop %v468
  %v470 = vmul.f32 %v458, 1.442695
  %v471 = vpow.pop %v470
  %v472 = vmul.f32 %v459, 1.442695
  %v473 = vpow.pop %v472
  %v474 = vmul.f32 %v460, 1.442695
  %v475 = vpow.pop %v474
  %v476 = vmul.f32 %v461, 1.442695
  %v477 = vpow.pop %v476
  %v478 = vsel %vm428, %v463, 0.0
  %479 = vadd.xlane.f32.xlu0 %v478
  %v480 = vpop.xlane.xlu0 %479
  %v481 = vsel %vm432, %v465, 0.0
  %482 = vadd.xlane.f32.xlu0 %v481
  %v483 = vpop.xlane.xlu0 %482
  %v484 = vsel %vm428, %v467, 0.0
  %485 = vadd.xlane.f32.xlu0 %v484
  %v486 = vpop.xlane.xlu0 %485
  %v487 = vsel %vm432, %v469, 0.0
  %488 = vadd.xlane.f32.xlu0 %v487
  %v489 = vpop.xlane.xlu0 %488
  %v490 = vsel %vm428, %v471, 0.0
  %491 = vadd.xlane.f32.xlu0 %v490
  %v492 = vpop.xlane.xlu0 %491
  %v493 = vsel %vm432, %v473, 0.0
  %494 = vadd.xlane.f32.xlu0 %v493
  %v495 = vpop.xlane.xlu0 %494
  %v496 = vsel %vm428, %v475, 0.0
  %497 = vadd.xlane.f32.xlu0 %v496
  %v498 = vpop.xlane.xlu0 %497
  %v499 = vsel %vm432, %v477, 0.0
  %500 = vadd.xlane.f32.xlu0 %v499
  %v501 = vpop.xlane.xlu0 %500
  %v502 = vrcp.pop %v480
  %v503 = vrcp.pop %v483
  %v504 = vrcp.pop %v486
  %v505 = vrcp.pop %v489
  %v506 = vrcp.pop %v492
  %v507 = vrcp.pop %v495
  %v508 = vrcp.pop %v498
  %v509 = vrcp.pop %v501
  %v510 = vmul.f32 %v463, %v502
  %v511 = vmul.f32 %v465, %v503
  %v512 = vmul.f32 %v467, %v504
  %v513 = vmul.f32 %v469, %v505
  %v514 = vmul.f32 %v471, %v506
  %v515 = vmul.f32 %v473, %v507
  %v516 = vmul.f32 %v475, %v508
  %v517 = vmul.f32 %v477, %v509
  %v518 = vpack.c.bf16 %v510, %v510
  %v519 = vpack.c.bf16 %v511, %v511
  %v520 = vpack.c.bf16 %v512, %v512
  %v521 = vpack.c.bf16 %v513, %v513
  %v522 = vpack.c.bf16 %v514, %v514
  %v523 = vpack.c.bf16 %v515, %v515
  %v524 = vpack.c.bf16 %v516, %v516
  %v525 = vpack.c.bf16 %v517, %v517
  %v528 = vunpack.c.l.b16 %v518
  %v529 = vunpack.c.l.b16 %v519
  %v530 = vpack.c.b16 %v529, %v528
  %531 = vrot.lane.b32.xlu0 %v323, 64
  %v532 = vpop.permute.xlu0 %531
  %v534 = vsel %vm428, %v530, 0
  %v537 = vsel %vm180, %v532, 0
  %539 = vmatpush.bf16.msra.mxu0 0
  %540 = vmatpush.bf16.msra.mxu0 0
  %541 = vmatpush.bf16.msra.mxu0 0
  %542 = vmatpush.bf16.msra.mxu0 0
  %543 = vmatpush.bf16.msra.mxu0 0
  %544 = vmatpush.bf16.msra.mxu0 0
  %545 = vmatpush.bf16.msra.mxu0 0
  %546 = vmatpush.bf16.msra.mxu0 %v537
  %547 = vmatmul.bf16.gmra.mxu0 %v534
  %v548 = vpop.f32.mrf.mxu0
  %v549 = vadd.f32 0.0, %v548
  %v550 = vpop.f32.mrf.mxu0
  %v551 = vadd.f32 0.0, %v550
  %552 = vdwg.mxu0
  %v555 = vunpack.c.l.b16 %v520
  %v556 = vunpack.c.l.b16 %v521
  %v557 = vpack.c.b16 %v556, %v555
  %558 = vrot.lane.b32.xlu0 %v351, 64
  %v559 = vpop.permute.xlu0 %558
  %v561 = vsel %vm428, %v557, 0
  %v564 = vsel %vm180, %v559, 0
  %566 = vmatpush.bf16.msra.mxu0 0
  %567 = vmatpush.bf16.msra.mxu0 0
  %568 = vmatpush.bf16.msra.mxu0 0
  %569 = vmatpush.bf16.msra.mxu0 0
  %570 = vmatpush.bf16.msra.mxu0 0
  %571 = vmatpush.bf16.msra.mxu0 0
  %572 = vmatpush.bf16.msra.mxu0 0
  %573 = vmatpush.bf16.msra.mxu0 %v564
  %574 = vmatmul.bf16.gmra.mxu0 %v561
  %v575 = vpop.f32.mrf.mxu0
  %v576 = vadd.f32 0.0, %v575
  %v577 = vpop.f32.mrf.mxu0
  %v578 = vadd.f32 0.0, %v577
  %579 = vdwg.mxu0
  %v582 = vunpack.c.l.b16 %v522
  %v583 = vunpack.c.l.b16 %v523
  %v584 = vpack.c.b16 %v583, %v582
  %585 = vrot.lane.b32.xlu0 %v378, 64
  %v586 = vpop.permute.xlu0 %585
  %v588 = vsel %vm428, %v584, 0
  %v591 = vsel %vm180, %v586, 0
  %593 = vmatpush.bf16.msra.mxu0 0
  %594 = vmatpush.bf16.msra.mxu0 0
  %595 = vmatpush.bf16.msra.mxu0 0
  %596 = vmatpush.bf16.msra.mxu0 0
  %597 = vmatpush.bf16.msra.mxu0 0
  %598 = vmatpush.bf16.msra.mxu0 0
  %599 = vmatpush.bf16.msra.mxu0 0
  %600 = vmatpush.bf16.msra.mxu0 %v591
  %601 = vmatmul.bf16.gmra.mxu0 %v588
  %v602 = vpop.f32.mrf.mxu0
  %v603 = vadd.f32 0.0, %v602
  %v604 = vpop.f32.mrf.mxu0
  %v605 = vadd.f32 0.0, %v604
  %606 = vdwg.mxu0
  %v609 = vunpack.c.l.b16 %v524
  %v610 = vunpack.c.l.b16 %v525
  %v611 = vpack.c.b16 %v610, %v609
  %612 = vrot.lane.b32.xlu0 %v405, 64
  %v613 = vpop.permute.xlu0 %612
  %v615 = vsel %vm428, %v611, 0
  %v618 = vsel %vm180, %v613, 0
  %620 = vmatpush.bf16.msra.mxu0 0
  %621 = vmatpush.bf16.msra.mxu0 0
  %622 = vmatpush.bf16.msra.mxu0 0
  %623 = vmatpush.bf16.msra.mxu0 0
  %624 = vmatpush.bf16.msra.mxu0 0
  %625 = vmatpush.bf16.msra.mxu0 0
  %626 = vmatpush.bf16.msra.mxu0 0
  %627 = vmatpush.bf16.msra.mxu0 %v618
  %628 = vmatmul.bf16.gmra.mxu0 %v615
  %v629 = vpop.f32.mrf.mxu0
  %v630 = vadd.f32 0.0, %v629
  %v631 = vpop.f32.mrf.mxu0
  %v632 = vadd.f32 0.0, %v631
  %633 = vdwg.mxu0
  %636 = vrot.lane.b32.xlu0 %v576, 8
  %v637 = vpop.permute.xlu0 %636
  %638 = vrot.lane.b32.xlu0 %v578, 8
  %v639 = vpop.permute.xlu0 %638
  %644 = vrot.lane.b32.xlu0 %v603, 16
  %v645 = vpop.permute.xlu0 %644
  %646 = vrot.lane.b32.xlu0 %v605, 16
  %v647 = vpop.permute.xlu0 %646
  %652 = vrot.lane.b32.xlu0 %v630, 24
  %v653 = vpop.permute.xlu0 %652
  %654 = vrot.lane.b32.xlu0 %v632, 24
  %v655 = vpop.permute.xlu0 %654
  %v658 = vsel %vm326, %v549, %v637
  %v659 = vsel %vm326, %v551, %v639
  %vm660 = vcmask 130048
  %v661 = vsel %vm660, %v658, %v645
  %v662 = vsel %vm660, %v659, %v647
  %vm663 = vcmask 195584
  %v664 = vsel %vm663, %v661, %v653
  %v665 = vsel %vm663, %v662, %v655
  %v666 = vpack.c.bf16 %v665, %v664
  %v667 = vld [vmem:[%s6] sm:$0xf]
  %v668 = vld [vmem:[%s6 + $0x4] sm:$0xf]
  %v669 = vld [vmem:[%s6 + $0x8] sm:$0xf]
  %v670 = vld [vmem:[%s6 + $0xc] sm:$0xf]
  %v671 = vperm.slane %v193, 2
  %v676 = vunpack.c.l.b16 %v667
  %v677 = vunpack.c.l.b16 %v668
  %v678 = vunpack.c.l.b16 %v669
  %v679 = vunpack.c.l.b16 %v670
  %v680 = vpack.c.b16 %v677, %v676
  %v681 = vpack.c.b16 %v679, %v678
  %v685 = vsel %vm194, %v666, 0
  %687 = vmatpush.bf16.msra.mxu0 0
  %688 = vmatpush.bf16.msra.mxu0 0
  %689 = vmatpush.bf16.msra.mxu0 0
  %690 = vmatpush.bf16.msra.mxu0 0
  %691 = vmatpush.bf16.msra.mxu0 0
  %692 = vmatpush.bf16.msra.mxu0 0
  %693 = vmatpush.bf16.msra.mxu0 %v681
  %694 = vmatpush.bf16.msra.mxu0 %v680
  %695 = vmatmul.bf16.gmra.mxu0 %v685
  %v696 = vpop.f32.mrf.mxu0
  %v697 = vadd.f32 %v671, %v696
  %v698 = vpop.f32.mrf.mxu0
  %v699 = vadd.f32 %v671, %v698
  %700 = vdwg.mxu0
  %v701 = vadd.f32 %v191, %v697
  %v702 = vadd.f32 %v192, %v699
  %v703 = vsel %vm194, %v701, 0.0
  %704 = vadd.xlane.f32.xlu0 %v703
  %v705 = vpop.xlane.xlu0 %704
  %v706 = vsel %vm198, %v702, 0.0
  %707 = vadd.xlane.f32.xlu0 %v706
  %v708 = vpop.xlane.xlu0 %707
  %v709 = vmul.f32 %v705, %v208
  %v710 = vmul.f32 %v708, %v208
  %v711 = vsub.f32 %v701, %v709
  %v712 = vsub.f32 %v702, %v710
  %v713 = vmul.f32 %v711, %v711
  %v714 = vmul.f32 %v712, %v712
  %v715 = vsel %vm194, %v713, 0.0
  %716 = vadd.xlane.f32.xlu0 %v715
  %v717 = vpop.xlane.xlu0 %716
  %v718 = vsel %vm198, %v714, 0.0
  %719 = vadd.xlane.f32.xlu0 %v718
  %v720 = vpop.xlane.xlu0 %719
  %v721 = vmul.f32 %v717, %v208
  %v722 = vmul.f32 %v720, %v208
  %v723 = vadd.f32 %v721, 1e-12
  %v724 = vadd.f32 %v722, 1e-12
  %v725 = vrsqrt.pop %v723
  %v726 = vmul.f32 %v725, %v723
  %v727 = vmul.f32 %v726, %v725
  %v728 = vmul.f32 0.5, %v727
  %v729 = vsub.f32 1.5, %v728
  %v730 = vmul.f32 %v725, %v729
  %vm731 = vweird.f32 %v723
  %vm732 = vweird.f32 %v725
  %vm733 = vmor %vm731, %vm732
  %v734 = vsel %vm733, %v725, %v730
  %v735 = vrsqrt.pop %v724
  %v736 = vmul.f32 %v735, %v724
  %v737 = vmul.f32 %v736, %v735
  %v738 = vmul.f32 0.5, %v737
  %v739 = vsub.f32 1.5, %v738
  %v740 = vmul.f32 %v735, %v739
  %vm741 = vweird.f32 %v724
  %vm742 = vweird.f32 %v735
  %vm743 = vmor %vm741, %vm742
  %v744 = vsel %vm743, %v735, %v740
  %v745 = vmul.f32 %v711, %v734
  %v746 = vmul.f32 %v712, %v744
  %v747 = vperm.slane %v193, 3
  %v748 = vmul.f32 %v745, %v747
  %v749 = vmul.f32 %v746, %v747
  %v750 = vperm.slane %v193, 4
  %v751 = vadd.f32 %v748, %v750
  %v752 = vadd.f32 %v749, %v750
  %v753 = vpack.c.bf16 %v752, %v751
  %v754 = vld [vmem:[%s7] sm:$0xf]
  %v755 = vld [vmem:[%s7 + $0x4] sm:$0xf]
  %v756 = vld [vmem:[%s7 + $0x8] sm:$0xf]
  %v757 = vld [vmem:[%s7 + $0xc] sm:$0xf]
  %v758 = vld [vmem:[%s8] sm:$0x1]
  %v760 = vperm.slane %v758, 0
  %v766 = vunpack.c.l.b16 %v754
  %v767 = vunpack.c.l.b16 %v755
  %v768 = vunpack.c.l.b16 %v756
  %v769 = vunpack.c.l.b16 %v757
  %v770 = vpack.c.b16 %v767, %v766
  %v771 = vpack.c.b16 %v769, %v768
  %v775 = vsel %vm194, %v753, 0
  %777 = vmatpush.bf16.msra.mxu0 0
  %778 = vmatpush.bf16.msra.mxu0 0
  %779 = vmatpush.bf16.msra.mxu0 0
  %780 = vmatpush.bf16.msra.mxu0 0
  %781 = vmatpush.bf16.msra.mxu0 0
  %782 = vmatpush.bf16.msra.mxu0 0
  %783 = vmatpush.bf16.msra.mxu0 %v771
  %784 = vmatpush.bf16.msra.mxu0 %v770
  %785 = vmatmul.bf16.gmra.mxu0 %v775
  %v786 = vpop.f32.mrf.mxu0
  %v787 = vadd.f32 %v760, %v786
  %v788 = vpop.f32.mrf.mxu0
  %v789 = vadd.f32 %v760, %v788
  %790 = vdwg.mxu0
  %v791 = vmul.f32 %v787, 0.5
  %v792 = vmul.f32 %v789, 0.5
  %v793 = vmul.f32 %v787, 0.70710677
  %v794 = vmul.f32 %v789, 0.70710677
  %v795 = vand.u32 2147483647, %v793
  %v796 = vand.u32 2147483647, %v794
  %v797 = vmul.f32 %v795, 0.3275911
  %v798 = vmul.f32 %v796, 0.3275911
  %v799 = vadd.f32 %v797, 1.0
  %v800 = vadd.f32 %v798, 1.0
  %v801 = vrcp.pop %v799
  %v802 = vmul.f32 %v799, %v801
  %v803 = vsub.f32 1.0, %v802
  %v804 = vmul.f32 %v801, %v803
  %v805 = vadd.f32 %v801, %v804
  %vm806 = vweird.f32 %v799
  %vm807 = vweird.f32 %v801
  %vm808 = vmor %vm806, %vm807
  %v809 = vsel %vm808, %v801, %v805
  %v810 = vand.u32 2147483647, %v799
  %vm811 = vcmp.eq.f32.partialorder %v810, 8.507059e+37
  %v812 = vand.u32 %v799, 2147483648
  %v813 = vor.u32 1.1754944e-38, %v812
  %v814 = vsel %vm811, %v813, %v809
  %v815 = vmul.f32 1.0, %v814
  %v816 = vrcp.pop %v800
  %v817 = vmul.f32 %v800, %v816
  %v818 = vsub.f32 1.0, %v817
  %v819 = vmul.f32 %v816, %v818
  %v820 = vadd.f32 %v816, %v819
  %vm821 = vweird.f32 %v800
  %vm822 = vweird.f32 %v816
  %vm823 = vmor %vm821, %vm822
  %v824 = vsel %vm823, %v816, %v820
  %v825 = vand.u32 2147483647, %v800
  %vm826 = vcmp.eq.f32.partialorder %v825, 8.507059e+37
  %v827 = vand.u32 %v800, 2147483648
  %v828 = vor.u32 1.1754944e-38, %v827
  %v829 = vsel %vm826, %v828, %v824
  %v830 = vmul.f32 1.0, %v829
  %v831 = vmul.f32 %v815, 1.0614054
  %v832 = vmul.f32 %v830, 1.0614054
  %v833 = vadd.f32 %v831, -1.4531521
  %v834 = vadd.f32 %v832, -1.4531521
  %v835 = vmul.f32 %v833, %v815
  %v836 = vmul.f32 %v834, %v830
  %v837 = vadd.f32 %v835, 1.4214138
  %v838 = vadd.f32 %v836, 1.4214138
  %v839 = vmul.f32 %v837, %v815
  %v840 = vmul.f32 %v838, %v830
  %v841 = vadd.f32 %v839, -0.28449672
  %v842 = vadd.f32 %v840, -0.28449672
  %v843 = vmul.f32 %v841, %v815
  %v844 = vmul.f32 %v842, %v830
  %v845 = vadd.f32 %v843, 0.2548296
  %v846 = vadd.f32 %v844, 0.2548296
  %v847 = vmul.f32 %v845, %v815
  %v848 = vmul.f32 %v846, %v830
  %v849 = vsub.f32 0.0, %v795
  %v850 = vsub.f32 0.0, %v796
  %v851 = vmul.f32 %v849, %v795
  %v852 = vmul.f32 %v850, %v796
  %v853 = vmul.f32 %v851, 1.442695
  %v854 = vpow.pop %v853
  %v855 = vmul.f32 %v852, 1.442695
  %v856 = vpow.pop %v855
  %v857 = vmul.f32 %v847, %v854
  %v858 = vmul.f32 %v848, %v856
  %v859 = vsub.f32 1.0, %v857
  %v860 = vsub.f32 1.0, %v858
  %vm861 = vcmp.ge.f32.partialorder %v793, 0.0
  %vm862 = vcmp.ge.f32.partialorder %v794, 0.0
  %v863 = vsub.f32 0.0, %v859
  %v864 = vsub.f32 0.0, %v860
  %v865 = vsel %vm861, %v859, %v863
  %v866 = vsel %vm862, %v860, %v864
  %v867 = vadd.f32 %v865, 1.0
  %v868 = vadd.f32 %v866, 1.0
  %v869 = vmul.f32 %v791, %v867
  %v870 = vmul.f32 %v792, %v868
  %v871 = vpack.c.bf16 %v870, %v869
  %v872 = vld [vmem:[%s9] sm:$0xf]
  %v873 = vld [vmem:[%s9 + $0x4] sm:$0xf]
  %v874 = vld [vmem:[%s9 + $0x8] sm:$0xf]
  %v875 = vld [vmem:[%s9 + $0xc] sm:$0xf]
  %v876 = vld [vmem:[%s9 + $0x10] sm:$0xf]
  %v877 = vld [vmem:[%s9 + $0x14] sm:$0xf]
  %v878 = vld [vmem:[%s9 + $0x18] sm:$0xf]
  %v879 = vld [vmem:[%s9 + $0x1c] sm:$0xf]
  %v880 = vperm.slane %v193, 5
  %v889 = vunpack.c.l.b16 %v872
  %v890 = vunpack.c.l.b16 %v873
  %v891 = vunpack.c.l.b16 %v874
  %v892 = vunpack.c.l.b16 %v875
  %v893 = vunpack.c.l.b16 %v876
  %v894 = vunpack.c.l.b16 %v877
  %v895 = vunpack.c.l.b16 %v878
  %v896 = vunpack.c.l.b16 %v879
  %v897 = vpack.c.b16 %v890, %v889
  %v898 = vpack.c.b16 %v892, %v891
  %v899 = vpack.c.b16 %v894, %v893
  %v900 = vpack.c.b16 %v896, %v895
  %v906 = vsel %vm143, %v871, 0
  %908 = vmatpush.bf16.msra.mxu0 0
  %909 = vmatpush.bf16.msra.mxu0 0
  %910 = vmatpush.bf16.msra.mxu0 0
  %911 = vmatpush.bf16.msra.mxu0 0
  %912 = vmatpush.bf16.msra.mxu0 %v900
  %913 = vmatpush.bf16.msra.mxu0 %v899
  %914 = vmatpush.bf16.msra.mxu0 %v898
  %915 = vmatpush.bf16.msra.mxu0 %v897
  %916 = vmatmul.bf16.gmra.mxu0 %v906
  %v917 = vpop.f32.mrf.mxu0
  %v918 = vadd.f32 %v880, %v917
  %v919 = vpop.f32.mrf.mxu0
  %v920 = vadd.f32 %v880, %v919
  %921 = vdwg.mxu0
  %v922 = vadd.f32 %v701, %v918
  %v923 = vadd.f32 %v702, %v920
  %s924 = scalar_lea.vmem %s10, 8
  %v925 = vld [vmem:[%s924] sm:$0x3f]
  %v926 = vsel %vm194, %v922, 0.0
  %927 = vadd.xlane.f32.xlu0 %v926
  %v928 = vpop.xlane.xlu0 %927
  %v929 = vsel %vm198, %v923, 0.0
  %930 = vadd.xlane.f32.xlu0 %v929
  %v931 = vpop.xlane.xlu0 %930
  %v932 = vmul.f32 %v928, %v208
  %v933 = vmul.f32 %v931, %v208
  %v934 = vsub.f32 %v922, %v932
  %v935 = vsub.f32 %v923, %v933
  %v936 = vmul.f32 %v934, %v934
  %v937 = vmul.f32 %v935, %v935
  %v938 = vsel %vm194, %v936, 0.0
  %939 = vadd.xlane.f32.xlu0 %v938
  %v940 = vpop.xlane.xlu0 %939
  %v941 = vsel %vm198, %v937, 0.0
  %942 = vadd.xlane.f32.xlu0 %v941
  %v943 = vpop.xlane.xlu0 %942
  %v944 = vmul.f32 %v940, %v208
  %v945 = vmul.f32 %v943, %v208
  %v946 = vadd.f32 %v944, 1e-12
  %v947 = vadd.f32 %v945, 1e-12
  %v948 = vrsqrt.pop %v946
  %v949 = vmul.f32 %v948, %v946
  %v950 = vmul.f32 %v949, %v948
  %v951 = vmul.f32 0.5, %v950
  %v952 = vsub.f32 1.5, %v951
  %v953 = vmul.f32 %v948, %v952
  %vm954 = vweird.f32 %v946
  %vm955 = vweird.f32 %v948
  %vm956 = vmor %vm954, %vm955
  %v957 = vsel %vm956, %v948, %v953
  %v958 = vrsqrt.pop %v947
  %v959 = vmul.f32 %v958, %v947
  %v960 = vmul.f32 %v959, %v958
  %v961 = vmul.f32 0.5, %v960
  %v962 = vsub.f32 1.5, %v961
  %v963 = vmul.f32 %v958, %v962
  %vm964 = vweird.f32 %v947
  %vm965 = vweird.f32 %v958
  %vm966 = vmor %vm964, %vm965
  %v967 = vsel %vm966, %v958, %v963
  %v968 = vmul.f32 %v934, %v957
  %v969 = vmul.f32 %v935, %v967
  %v970 = vperm.slane %v925, 0
  %v971 = vmul.f32 %v968, %v970
  %v972 = vmul.f32 %v969, %v970
  %v973 = vperm.slane %v925, 1
  %v974 = vadd.f32 %v971, %v973
  %v975 = vadd.f32 %v972, %v973
  %v976 = vpack.c.bf16 %v975, %v974
  %s977 = scalar_lea.vmem %s4, 16
  %v978 = vld [vmem:[%s977] sm:$0xf]
  %v979 = vld [vmem:[%s977 + $0x4] sm:$0xf]
  %v980 = vld [vmem:[%s977 + $0x8] sm:$0xf]
  %v981 = vld [vmem:[%s977 + $0xc] sm:$0xf]
  %s982 = scalar_lea.vmem %s5, 1
  %v983 = vld [vmem:[%s982] sm:$0x1]
  %v985 = vperm.slane %v983, 0
  %v991 = vunpack.c.l.b16 %v978
  %v992 = vunpack.c.l.b16 %v979
  %v993 = vunpack.c.l.b16 %v980
  %v994 = vunpack.c.l.b16 %v981
  %v995 = vpack.c.b16 %v992, %v991
  %v996 = vpack.c.b16 %v994, %v993
  %v1000 = vsel %vm194, %v976, 0
  %1002 = vmatpush.bf16.msra.mxu0 0
  %1003 = vmatpush.bf16.msra.mxu0 0
  %1004 = vmatpush.bf16.msra.mxu0 0
  %1005 = vmatpush.bf16.msra.mxu0 0
  %1006 = vmatpush.bf16.msra.mxu0 0
  %1007 = vmatpush.bf16.msra.mxu0 0
  %1008 = vmatpush.bf16.msra.mxu0 %v996
  %1009 = vmatpush.bf16.msra.mxu0 %v995
  %1010 = vmatmul.bf16.gmra.mxu0 %v1000
  %v1011 = vpop.f32.mrf.mxu0
  %v1012 = vadd.f32 %v985, %v1011
  %v1013 = vpop.f32.mrf.mxu0
  %v1014 = vadd.f32 %v985, %v1013
  %1015 = vdwg.mxu0
  %1018 = vrot.lane.b32.xlu0 %v1012, 120
  %v1019 = vpop.permute.xlu0 %1018
  %1020 = vrot.lane.b32.xlu0 %v1014, 120
  %v1021 = vpop.permute.xlu0 %1020
  %1024 = vrot.lane.b32.xlu0 %v1012, 112
  %v1025 = vpop.permute.xlu0 %1024
  %1026 = vrot.lane.b32.xlu0 %v1014, 112
  %v1027 = vpop.permute.xlu0 %1026
  %1030 = vrot.lane.b32.xlu0 %v1012, 104
  %v1031 = vpop.permute.xlu0 %1030
  %1032 = vrot.lane.b32.xlu0 %v1014, 104
  %v1033 = vpop.permute.xlu0 %1032
  %v1036 = vpack.c.bf16 %v1012, %v1012
  %v1037 = vpack.c.bf16 %v1014, %v1014
  %v1038 = vpack.c.bf16 %v1019, %v1019
  %v1039 = vpack.c.bf16 %v1021, %v1021
  %v1040 = vpack.c.bf16 %v1025, %v1025
  %v1041 = vpack.c.bf16 %v1027, %v1027
  %v1042 = vpack.c.bf16 %v1031, %v1031
  %v1043 = vpack.c.bf16 %v1033, %v1033
  %v1046 = vunpack.c.l.b16 %v1036
  %v1047 = vunpack.c.l.b16 %v1037
  %v1048 = vpack.c.b16 %v1047, %v1046
  %1049 = vrot.lane.b32.xlu0 %v1048, 96
  %v1050 = vpop.permute.xlu0 %1049
  %v1052 = vsel %vm326, %v1048, 0
  %v1055 = vsel %vm326, %v1050, 0
  %1057 = vmatpush.bf16.xpose.msra.mxu0 0
  %1058 = vmatpush.bf16.xpose.msra.mxu0 0
  %1059 = vmatpush.bf16.xpose.msra.mxu0 0
  %1060 = vmatpush.bf16.xpose.msra.mxu0 0
  %1061 = vmatpush.bf16.xpose.msra.mxu0 0
  %1062 = vmatpush.bf16.xpose.msra.mxu0 0
  %1063 = vmatpush.bf16.xpose.msra.mxu0 0
  %1064 = vmatpush.bf16.xpose.msra.mxu0 %v1055
  %1065 = vmatmul.bf16.gmra.mxu0 %v1052
  %v1066 = vpop.f32.mrf.mxu0
  %v1067 = vadd.f32 %v41, %v1066
  %v1068 = vpop.f32.mrf.mxu0
  %v1069 = vadd.f32 %v42, %v1068
  %1070 = vdwg.mxu0
  %v1073 = vunpack.c.l.b16 %v1038
  %v1074 = vunpack.c.l.b16 %v1039
  %v1075 = vpack.c.b16 %v1074, %v1073
  %1076 = vrot.lane.b32.xlu0 %v1075, 96
  %v1077 = vpop.permute.xlu0 %1076
  %v1079 = vsel %vm326, %v1075, 0
  %v1082 = vsel %vm326, %v1077, 0
  %1084 = vmatpush.bf16.xpose.msra.mxu0 0
  %1085 = vmatpush.bf16.xpose.msra.mxu0 0
  %1086 = vmatpush.bf16.xpose.msra.mxu0 0
  %1087 = vmatpush.bf16.xpose.msra.mxu0 0
  %1088 = vmatpush.bf16.xpose.msra.mxu0 0
  %1089 = vmatpush.bf16.xpose.msra.mxu0 0
  %1090 = vmatpush.bf16.xpose.msra.mxu0 0
  %1091 = vmatpush.bf16.xpose.msra.mxu0 %v1082
  %1092 = vmatmul.bf16.gmra.mxu0 %v1079
  %v1093 = vpop.f32.mrf.mxu0
  %v1094 = vadd.f32 %v41, %v1093
  %v1095 = vpop.f32.mrf.mxu0
  %v1096 = vadd.f32 %v42, %v1095
  %1097 = vdwg.mxu0
  %v1100 = vunpack.c.l.b16 %v1040
  %v1101 = vunpack.c.l.b16 %v1041
  %v1102 = vpack.c.b16 %v1101, %v1100
  %1103 = vrot.lane.b32.xlu0 %v1102, 96
  %v1104 = vpop.permute.xlu0 %1103
  %v1106 = vsel %vm326, %v1102, 0
  %v1109 = vsel %vm326, %v1104, 0
  %1111 = vmatpush.bf16.xpose.msra.mxu0 0
  %1112 = vmatpush.bf16.xpose.msra.mxu0 0
  %1113 = vmatpush.bf16.xpose.msra.mxu0 0
  %1114 = vmatpush.bf16.xpose.msra.mxu0 0
  %1115 = vmatpush.bf16.xpose.msra.mxu0 0
  %1116 = vmatpush.bf16.xpose.msra.mxu0 0
  %1117 = vmatpush.bf16.xpose.msra.mxu0 0
  %1118 = vmatpush.bf16.xpose.msra.mxu0 %v1109
  %1119 = vmatmul.bf16.gmra.mxu0 %v1106
  %v1120 = vpop.f32.mrf.mxu0
  %v1121 = vadd.f32 %v41, %v1120
  %v1122 = vpop.f32.mrf.mxu0
  %v1123 = vadd.f32 %v42, %v1122
  %1124 = vdwg.mxu0
  %v1127 = vunpack.c.l.b16 %v1042
  %v1128 = vunpack.c.l.b16 %v1043
  %v1129 = vpack.c.b16 %v1128, %v1127
  %1130 = vrot.lane.b32.xlu0 %v1129, 96
  %v1131 = vpop.permute.xlu0 %1130
  %v1133 = vsel %vm326, %v1129, 0
  %v1136 = vsel %vm326, %v1131, 0
  %1138 = vmatpush.bf16.xpose.msra.mxu0 0
  %1139 = vmatpush.bf16.xpose.msra.mxu0 0
  %1140 = vmatpush.bf16.xpose.msra.mxu0 0
  %1141 = vmatpush.bf16.xpose.msra.mxu0 0
  %1142 = vmatpush.bf16.xpose.msra.mxu0 0
  %1143 = vmatpush.bf16.xpose.msra.mxu0 0
  %1144 = vmatpush.bf16.xpose.msra.mxu0 0
  %1145 = vmatpush.bf16.xpose.msra.mxu0 %v1136
  %1146 = vmatmul.bf16.gmra.mxu0 %v1133
  %v1147 = vpop.f32.mrf.mxu0
  %v1148 = vadd.f32 %v41, %v1147
  %v1149 = vpop.f32.mrf.mxu0
  %v1150 = vadd.f32 %v42, %v1149
  %1151 = vdwg.mxu0
  %v1152 = vsel %vm428, %v1067, -inf
  %1153 = vmax.xlane.f32.xlu0 %v1152
  %v1154 = vpop.xlane.xlu0 %1153
  %v1155 = vsel %vm432, %v1069, -inf
  %1156 = vmax.xlane.f32.xlu0 %v1155
  %v1157 = vpop.xlane.xlu0 %1156
  %v1158 = vsel %vm428, %v1094, -inf
  %1159 = vmax.xlane.f32.xlu0 %v1158
  %v1160 = vpop.xlane.xlu0 %1159
  %v1161 = vsel %vm432, %v1096, -inf
  %1162 = vmax.xlane.f32.xlu0 %v1161
  %v1163 = vpop.xlane.xlu0 %1162
  %v1164 = vsel %vm428, %v1121, -inf
  %1165 = vmax.xlane.f32.xlu0 %v1164
  %v1166 = vpop.xlane.xlu0 %1165
  %v1167 = vsel %vm432, %v1123, -inf
  %1168 = vmax.xlane.f32.xlu0 %v1167
  %v1169 = vpop.xlane.xlu0 %1168
  %v1170 = vsel %vm428, %v1148, -inf
  %1171 = vmax.xlane.f32.xlu0 %v1170
  %v1172 = vpop.xlane.xlu0 %1171
  %v1173 = vsel %vm432, %v1150, -inf
  %1174 = vmax.xlane.f32.xlu0 %v1173
  %v1175 = vpop.xlane.xlu0 %1174
  %v1176 = vsub.f32 %v1067, %v1154
  %v1177 = vsub.f32 %v1069, %v1157
  %v1178 = vsub.f32 %v1094, %v1160
  %v1179 = vsub.f32 %v1096, %v1163
  %v1180 = vsub.f32 %v1121, %v1166
  %v1181 = vsub.f32 %v1123, %v1169
  %v1182 = vsub.f32 %v1148, %v1172
  %v1183 = vsub.f32 %v1150, %v1175
  %v1184 = vmul.f32 %v1176, 1.442695
  %v1185 = vpow.pop %v1184
  %v1186 = vmul.f32 %v1177, 1.442695
  %v1187 = vpow.pop %v1186
  %v1188 = vmul.f32 %v1178, 1.442695
  %v1189 = vpow.pop %v1188
  %v1190 = vmul.f32 %v1179, 1.442695
  %v1191 = vpow.pop %v1190
  %v1192 = vmul.f32 %v1180, 1.442695
  %v1193 = vpow.pop %v1192
  %v1194 = vmul.f32 %v1181, 1.442695
  %v1195 = vpow.pop %v1194
  %v1196 = vmul.f32 %v1182, 1.442695
  %v1197 = vpow.pop %v1196
  %v1198 = vmul.f32 %v1183, 1.442695
  %v1199 = vpow.pop %v1198
  %v1200 = vsel %vm428, %v1185, 0.0
  %1201 = vadd.xlane.f32.xlu0 %v1200
  %v1202 = vpop.xlane.xlu0 %1201
  %v1203 = vsel %vm432, %v1187, 0.0
  %1204 = vadd.xlane.f32.xlu0 %v1203
  %v1205 = vpop.xlane.xlu0 %1204
  %v1206 = vsel %vm428, %v1189, 0.0
  %1207 = vadd.xlane.f32.xlu0 %v1206
  %v1208 = vpop.xlane.xlu0 %1207
  %v1209 = vsel %vm432, %v1191, 0.0
  %1210 = vadd.xlane.f32.xlu0 %v1209
  %v1211 = vpop.xlane.xlu0 %1210
  %v1212 = vsel %vm428, %v1193, 0.0
  %1213 = vadd.xlane.f32.xlu0 %v1212
  %v1214 = vpop.xlane.xlu0 %1213
  %v1215 = vsel %vm432, %v1195, 0.0
  %1216 = vadd.xlane.f32.xlu0 %v1215
  %v1217 = vpop.xlane.xlu0 %1216
  %v1218 = vsel %vm428, %v1197, 0.0
  %1219 = vadd.xlane.f32.xlu0 %v1218
  %v1220 = vpop.xlane.xlu0 %1219
  %v1221 = vsel %vm432, %v1199, 0.0
  %1222 = vadd.xlane.f32.xlu0 %v1221
  %v1223 = vpop.xlane.xlu0 %1222
  %v1224 = vrcp.pop %v1202
  %v1225 = vrcp.pop %v1205
  %v1226 = vrcp.pop %v1208
  %v1227 = vrcp.pop %v1211
  %v1228 = vrcp.pop %v1214
  %v1229 = vrcp.pop %v1217
  %v1230 = vrcp.pop %v1220
  %v1231 = vrcp.pop %v1223
  %v1232 = vmul.f32 %v1185, %v1224
  %v1233 = vmul.f32 %v1187, %v1225
  %v1234 = vmul.f32 %v1189, %v1226
  %v1235 = vmul.f32 %v1191, %v1227
  %v1236 = vmul.f32 %v1193, %v1228
  %v1237 = vmul.f32 %v1195, %v1229
  %v1238 = vmul.f32 %v1197, %v1230
  %v1239 = vmul.f32 %v1199, %v1231
  %v1240 = vpack.c.bf16 %v1232, %v1232
  %v1241 = vpack.c.bf16 %v1233, %v1233
  %v1242 = vpack.c.bf16 %v1234, %v1234
  %v1243 = vpack.c.bf16 %v1235, %v1235
  %v1244 = vpack.c.bf16 %v1236, %v1236
  %v1245 = vpack.c.bf16 %v1237, %v1237
  %v1246 = vpack.c.bf16 %v1238, %v1238
  %v1247 = vpack.c.bf16 %v1239, %v1239
  %v1250 = vunpack.c.l.b16 %v1240
  %v1251 = vunpack.c.l.b16 %v1241
  %v1252 = vpack.c.b16 %v1251, %v1250
  %1253 = vrot.lane.b32.xlu0 %v1048, 64
  %v1254 = vpop.permute.xlu0 %1253
  %v1256 = vsel %vm428, %v1252, 0
  %v1259 = vsel %vm180, %v1254, 0
  %1261 = vmatpush.bf16.msra.mxu0 0
  %1262 = vmatpush.bf16.msra.mxu0 0
  %1263 = vmatpush.bf16.msra.mxu0 0
  %1264 = vmatpush.bf16.msra.mxu0 0
  %1265 = vmatpush.bf16.msra.mxu0 0
  %1266 = vmatpush.bf16.msra.mxu0 0
  %1267 = vmatpush.bf16.msra.mxu0 0
  %1268 = vmatpush.bf16.msra.mxu0 %v1259
  %1269 = vmatmul.bf16.gmra.mxu0 %v1256
  %v1270 = vpop.f32.mrf.mxu0
  %v1271 = vadd.f32 0.0, %v1270
  %v1272 = vpop.f32.mrf.mxu0
  %v1273 = vadd.f32 0.0, %v1272
  %1274 = vdwg.mxu0
  %v1277 = vunpack.c.l.b16 %v1242
  %v1278 = vunpack.c.l.b16 %v1243
  %v1279 = vpack.c.b16 %v1278, %v1277
  %1280 = vrot.lane.b32.xlu0 %v1075, 64
  %v1281 = vpop.permute.xlu0 %1280
  %v1283 = vsel %vm428, %v1279, 0
  %v1286 = vsel %vm180, %v1281, 0
  %1288 = vmatpush.bf16.msra.mxu0 0
  %1289 = vmatpush.bf16.msra.mxu0 0
  %1290 = vmatpush.bf16.msra.mxu0 0
  %1291 = vmatpush.bf16.msra.mxu0 0
  %1292 = vmatpush.bf16.msra.mxu0 0
  %1293 = vmatpush.bf16.msra.mxu0 0
  %1294 = vmatpush.bf16.msra.mxu0 0
  %1295 = vmatpush.bf16.msra.mxu0 %v1286
  %1296 = vmatmul.bf16.gmra.mxu0 %v1283
  %v1297 = vpop.f32.mrf.mxu0
  %v1298 = vadd.f32 0.0, %v1297
  %v1299 = vpop.f32.mrf.mxu0
  %v1300 = vadd.f32 0.0, %v1299
  %1301 = vdwg.mxu0
  %v1304 = vunpack.c.l.b16 %v1244
  %v1305 = vunpack.c.l.b16 %v1245
  %v1306 = vpack.c.b16 %v1305, %v1304
  %1307 = vrot.lane.b32.xlu0 %v1102, 64
  %v1308 = vpop.permute.xlu0 %1307
  %v1310 = vsel %vm428, %v1306, 0
  %v1313 = vsel %vm180, %v1308, 0
  %1315 = vmatpush.bf16.msra.mxu0 0
  %1316 = vmatpush.bf16.msra.mxu0 0
  %1317 = vmatpush.bf16.msra.mxu0 0
  %1318 = vmatpush.bf16.msra.mxu0 0
  %1319 = vmatpush.bf16.msra.mxu0 0
  %1320 = vmatpush.bf16.msra.mxu0 0
  %1321 = vmatpush.bf16.msra.mxu0 0
  %1322 = vmatpush.bf16.msra.mxu0 %v1313
  %1323 = vmatmul.bf16.gmra.mxu0 %v1310
  %v1324 = vpop.f32.mrf.mxu0
  %v1325 = vadd.f32 0.0, %v1324
  %v1326 = vpop.f32.mrf.mxu0
  %v1327 = vadd.f32 0.0, %v1326
  %1328 = vdwg.mxu0
  %v1331 = vunpack.c.l.b16 %v1246
  %v1332 = vunpack.c.l.b16 %v1247
  %v1333 = vpack.c.b16 %v1332, %v1331
  %1334 = vrot.lane.b32.xlu0 %v1129, 64
  %v1335 = vpop.permute.xlu0 %1334
  %v1337 = vsel %vm428, %v1333, 0
  %v1340 = vsel %vm180, %v1335, 0
  %1342 = vmatpush.bf16.msra.mxu0 0
  %1343 = vmatpush.bf16.msra.mxu0 0
  %1344 = vmatpush.bf16.msra.mxu0 0
  %1345 = vmatpush.bf16.msra.mxu0 0
  %1346 = vmatpush.bf16.msra.mxu0 0
  %1347 = vmatpush.bf16.msra.mxu0 0
  %1348 = vmatpush.bf16.msra.mxu0 0
  %1349 = vmatpush.bf16.msra.mxu0 %v1340
  %1350 = vmatmul.bf16.gmra.mxu0 %v1337
  %v1351 = vpop.f32.mrf.mxu0
  %v1352 = vadd.f32 0.0, %v1351
  %v1353 = vpop.f32.mrf.mxu0
  %v1354 = vadd.f32 0.0, %v1353
  %1355 = vdwg.mxu0
  %1358 = vrot.lane.b32.xlu0 %v1298, 8
  %v1359 = vpop.permute.xlu0 %1358
  %1360 = vrot.lane.b32.xlu0 %v1300, 8
  %v1361 = vpop.permute.xlu0 %1360
  %1366 = vrot.lane.b32.xlu0 %v1325, 16
  %v1367 = vpop.permute.xlu0 %1366
  %1368 = vrot.lane.b32.xlu0 %v1327, 16
  %v1369 = vpop.permute.xlu0 %1368
  %1374 = vrot.lane.b32.xlu0 %v1352, 24
  %v1375 = vpop.permute.xlu0 %1374
  %1376 = vrot.lane.b32.xlu0 %v1354, 24
  %v1377 = vpop.permute.xlu0 %1376
  %v1380 = vsel %vm326, %v1271, %v1359
  %v1381 = vsel %vm326, %v1273, %v1361
  %v1382 = vsel %vm660, %v1380, %v1367
  %v1383 = vsel %vm660, %v1381, %v1369
  %v1384 = vsel %vm663, %v1382, %v1375
  %v1385 = vsel %vm663, %v1383, %v1377
  %v1386 = vpack.c.bf16 %v1385, %v1384
  %s1387 = scalar_lea.vmem %s6, 16
  %v1388 = vld [vmem:[%s1387] sm:$0xf]
  %v1389 = vld [vmem:[%s1387 + $0x4] sm:$0xf]
  %v1390 = vld [vmem:[%s1387 + $0x8] sm:$0xf]
  %v1391 = vld [vmem:[%s1387 + $0xc] sm:$0xf]
  %v1392 = vperm.slane %v925, 2
  %v1397 = vunpack.c.l.b16 %v1388
  %v1398 = vunpack.c.l.b16 %v1389
  %v1399 = vunpack.c.l.b16 %v1390
  %v1400 = vunpack.c.l.b16 %v1391
  %v1401 = vpack.c.b16 %v1398, %v1397
  %v1402 = vpack.c.b16 %v1400, %v1399
  %v1406 = vsel %vm194, %v1386, 0
  %1408 = vmatpush.bf16.msra.mxu0 0
  %1409 = vmatpush.bf16.msra.mxu0 0
  %1410 = vmatpush.bf16.msra.mxu0 0
  %1411 = vmatpush.bf16.msra.mxu0 0
  %1412 = vmatpush.bf16.msra.mxu0 0
  %1413 = vmatpush.bf16.msra.mxu0 0
  %1414 = vmatpush.bf16.msra.mxu0 %v1402
  %1415 = vmatpush.bf16.msra.mxu0 %v1401
  %1416 = vmatmul.bf16.gmra.mxu0 %v1406
  %v1417 = vpop.f32.mrf.mxu0
  %v1418 = vadd.f32 %v1392, %v1417
  %v1419 = vpop.f32.mrf.mxu0
  %v1420 = vadd.f32 %v1392, %v1419
  %1421 = vdwg.mxu0
  %v1422 = vadd.f32 %v922, %v1418
  %v1423 = vadd.f32 %v923, %v1420
  %v1424 = vsel %vm194, %v1422, 0.0
  %1425 = vadd.xlane.f32.xlu0 %v1424
  %v1426 = vpop.xlane.xlu0 %1425
  %v1427 = vsel %vm198, %v1423, 0.0
  %1428 = vadd.xlane.f32.xlu0 %v1427
  %v1429 = vpop.xlane.xlu0 %1428
  %v1430 = vmul.f32 %v1426, %v208
  %v1431 = vmul.f32 %v1429, %v208
  %v1432 = vsub.f32 %v1422, %v1430
  %v1433 = vsub.f32 %v1423, %v1431
  %v1434 = vmul.f32 %v1432, %v1432
  %v1435 = vmul.f32 %v1433, %v1433
  %v1436 = vsel %vm194, %v1434, 0.0
  %1437 = vadd.xlane.f32.xlu0 %v1436
  %v1438 = vpop.xlane.xlu0 %1437
  %v1439 = vsel %vm198, %v1435, 0.0
  %1440 = vadd.xlane.f32.xlu0 %v1439
  %v1441 = vpop.xlane.xlu0 %1440
  %v1442 = vmul.f32 %v1438, %v208
  %v1443 = vmul.f32 %v1441, %v208
  %v1444 = vadd.f32 %v1442, 1e-12
  %v1445 = vadd.f32 %v1443, 1e-12
  %v1446 = vrsqrt.pop %v1444
  %v1447 = vmul.f32 %v1446, %v1444
  %v1448 = vmul.f32 %v1447, %v1446
  %v1449 = vmul.f32 0.5, %v1448
  %v1450 = vsub.f32 1.5, %v1449
  %v1451 = vmul.f32 %v1446, %v1450
  %vm1452 = vweird.f32 %v1444
  %vm1453 = vweird.f32 %v1446
  %vm1454 = vmor %vm1452, %vm1453
  %v1455 = vsel %vm1454, %v1446, %v1451
  %v1456 = vrsqrt.pop %v1445
  %v1457 = vmul.f32 %v1456, %v1445
  %v1458 = vmul.f32 %v1457, %v1456
  %v1459 = vmul.f32 0.5, %v1458
  %v1460 = vsub.f32 1.5, %v1459
  %v1461 = vmul.f32 %v1456, %v1460
  %vm1462 = vweird.f32 %v1445
  %vm1463 = vweird.f32 %v1456
  %vm1464 = vmor %vm1462, %vm1463
  %v1465 = vsel %vm1464, %v1456, %v1461
  %v1466 = vmul.f32 %v1432, %v1455
  %v1467 = vmul.f32 %v1433, %v1465
  %v1468 = vperm.slane %v925, 3
  %v1469 = vmul.f32 %v1466, %v1468
  %v1470 = vmul.f32 %v1467, %v1468
  %v1471 = vperm.slane %v925, 4
  %v1472 = vadd.f32 %v1469, %v1471
  %v1473 = vadd.f32 %v1470, %v1471
  %v1474 = vpack.c.bf16 %v1473, %v1472
  %s1475 = scalar_lea.vmem %s7, 16
  %v1476 = vld [vmem:[%s1475] sm:$0xf]
  %v1477 = vld [vmem:[%s1475 + $0x4] sm:$0xf]
  %v1478 = vld [vmem:[%s1475 + $0x8] sm:$0xf]
  %v1479 = vld [vmem:[%s1475 + $0xc] sm:$0xf]
  %s1480 = scalar_lea.vmem %s8, 1
  %v1481 = vld [vmem:[%s1480] sm:$0x1]
  %v1483 = vperm.slane %v1481, 0
  %v1489 = vunpack.c.l.b16 %v1476
  %v1490 = vunpack.c.l.b16 %v1477
  %v1491 = vunpack.c.l.b16 %v1478
  %v1492 = vunpack.c.l.b16 %v1479
  %v1493 = vpack.c.b16 %v1490, %v1489
  %v1494 = vpack.c.b16 %v1492, %v1491
  %v1498 = vsel %vm194, %v1474, 0
  %1500 = vmatpush.bf16.msra.mxu0 0
  %1501 = vmatpush.bf16.msra.mxu0 0
  %1502 = vmatpush.bf16.msra.mxu0 0
  %1503 = vmatpush.bf16.msra.mxu0 0
  %1504 = vmatpush.bf16.msra.mxu0 0
  %1505 = vmatpush.bf16.msra.mxu0 0
  %1506 = vmatpush.bf16.msra.mxu0 %v1494
  %1507 = vmatpush.bf16.msra.mxu0 %v1493
  %1508 = vmatmul.bf16.gmra.mxu0 %v1498
  %v1509 = vpop.f32.mrf.mxu0
  %v1510 = vadd.f32 %v1483, %v1509
  %v1511 = vpop.f32.mrf.mxu0
  %v1512 = vadd.f32 %v1483, %v1511
  %1513 = vdwg.mxu0
  %v1514 = vmul.f32 %v1510, 0.5
  %v1515 = vmul.f32 %v1512, 0.5
  %v1516 = vmul.f32 %v1510, 0.70710677
  %v1517 = vmul.f32 %v1512, 0.70710677
  %v1518 = vand.u32 2147483647, %v1516
  %v1519 = vand.u32 2147483647, %v1517
  %v1520 = vmul.f32 %v1518, 0.3275911
  %v1521 = vmul.f32 %v1519, 0.3275911
  %v1522 = vadd.f32 %v1520, 1.0
  %v1523 = vadd.f32 %v1521, 1.0
  %v1524 = vrcp.pop %v1522
  %v1525 = vmul.f32 %v1522, %v1524
  %v1526 = vsub.f32 1.0, %v1525
  %v1527 = vmul.f32 %v1524, %v1526
  %v1528 = vadd.f32 %v1524, %v1527
  %vm1529 = vweird.f32 %v1522
  %vm1530 = vweird.f32 %v1524
  %vm1531 = vmor %vm1529, %vm1530
  %v1532 = vsel %vm1531, %v1524, %v1528
  %v1533 = vand.u32 2147483647, %v1522
  %vm1534 = vcmp.eq.f32.partialorder %v1533, 8.507059e+37
  %v1535 = vand.u32 %v1522, 2147483648
  %v1536 = vor.u32 1.1754944e-38, %v1535
  %v1537 = vsel %vm1534, %v1536, %v1532
  %v1538 = vmul.f32 1.0, %v1537
  %v1539 = vrcp.pop %v1523
  %v1540 = vmul.f32 %v1523, %v1539
  %v1541 = vsub.f32 1.0, %v1540
  %v1542 = vmul.f32 %v1539, %v1541
  %v1543 = vadd.f32 %v1539, %v1542
  %vm1544 = vweird.f32 %v1523
  %vm1545 = vweird.f32 %v1539
  %vm1546 = vmor %vm1544, %vm1545
  %v1547 = vsel %vm1546, %v1539, %v1543
  %v1548 = vand.u32 2147483647, %v1523
  %vm1549 = vcmp.eq.f32.partialorder %v1548, 8.507059e+37
  %v1550 = vand.u32 %v1523, 2147483648
  %v1551 = vor.u32 1.1754944e-38, %v1550
  %v1552 = vsel %vm1549, %v1551, %v1547
  %v1553 = vmul.f32 1.0, %v1552
  %v1554 = vmul.f32 %v1538, 1.0614054
  %v1555 = vmul.f32 %v1553, 1.0614054
  %v1556 = vadd.f32 %v1554, -1.4531521
  %v1557 = vadd.f32 %v1555, -1.4531521
  %v1558 = vmul.f32 %v1556, %v1538
  %v1559 = vmul.f32 %v1557, %v1553
  %v1560 = vadd.f32 %v1558, 1.4214138
  %v1561 = vadd.f32 %v1559, 1.4214138
  %v1562 = vmul.f32 %v1560, %v1538
  %v1563 = vmul.f32 %v1561, %v1553
  %v1564 = vadd.f32 %v1562, -0.28449672
  %v1565 = vadd.f32 %v1563, -0.28449672
  %v1566 = vmul.f32 %v1564, %v1538
  %v1567 = vmul.f32 %v1565, %v1553
  %v1568 = vadd.f32 %v1566, 0.2548296
  %v1569 = vadd.f32 %v1567, 0.2548296
  %v1570 = vmul.f32 %v1568, %v1538
  %v1571 = vmul.f32 %v1569, %v1553
  %v1572 = vsub.f32 0.0, %v1518
  %v1573 = vsub.f32 0.0, %v1519
  %v1574 = vmul.f32 %v1572, %v1518
  %v1575 = vmul.f32 %v1573, %v1519
  %v1576 = vmul.f32 %v1574, 1.442695
  %v1577 = vpow.pop %v1576
  %v1578 = vmul.f32 %v1575, 1.442695
  %v1579 = vpow.pop %v1578
  %v1580 = vmul.f32 %v1570, %v1577
  %v1581 = vmul.f32 %v1571, %v1579
  %v1582 = vsub.f32 1.0, %v1580
  %v1583 = vsub.f32 1.0, %v1581
  %vm1584 = vcmp.ge.f32.partialorder %v1516, 0.0
  %vm1585 = vcmp.ge.f32.partialorder %v1517, 0.0
  %v1586 = vsub.f32 0.0, %v1582
  %v1587 = vsub.f32 0.0, %v1583
  %v1588 = vsel %vm1584, %v1582, %v1586
  %v1589 = vsel %vm1585, %v1583, %v1587
  %v1590 = vadd.f32 %v1588, 1.0
  %v1591 = vadd.f32 %v1589, 1.0
  %v1592 = vmul.f32 %v1514, %v1590
  %v1593 = vmul.f32 %v1515, %v1591
  %v1594 = vpack.c.bf16 %v1593, %v1592
  %s1595 = scalar_lea.vmem %s9, 32
  %v1596 = vld [vmem:[%s1595] sm:$0xf]
  %v1597 = vld [vmem:[%s1595 + $0x4] sm:$0xf]
  %v1598 = vld [vmem:[%s1595 + $0x8] sm:$0xf]
  %v1599 = vld [vmem:[%s1595 + $0xc] sm:$0xf]
  %v1600 = vld [vmem:[%s1595 + $0x10] sm:$0xf]
  %v1601 = vld [vmem:[%s1595 + $0x14] sm:$0xf]
  %v1602 = vld [vmem:[%s1595 + $0x18] sm:$0xf]
  %v1603 = vld [vmem:[%s1595 + $0x1c] sm:$0xf]
  %v1604 = vperm.slane %v925, 5
  %v1613 = vunpack.c.l.b16 %v1596
  %v1614 = vunpack.c.l.b16 %v1597
  %v1615 = vunpack.c.l.b16 %v1598
  %v1616 = vunpack.c.l.b16 %v1599
  %v1617 = vunpack.c.l.b16 %v1600
  %v1618 = vunpack.c.l.b16 %v1601
  %v1619 = vunpack.c.l.b16 %v1602
  %v1620 = vunpack.c.l.b16 %v1603
  %v1621 = vpack.c.b16 %v1614, %v1613
  %v1622 = vpack.c.b16 %v1616, %v1615
  %v1623 = vpack.c.b16 %v1618, %v1617
  %v1624 = vpack.c.b16 %v1620, %v1619
  %v1630 = vsel %vm143, %v1594, 0
  %1632 = vmatpush.bf16.msra.mxu0 0
  %1633 = vmatpush.bf16.msra.mxu0 0
  %1634 = vmatpush.bf16.msra.mxu0 0
  %1635 = vmatpush.bf16.msra.mxu0 0
  %1636 = vmatpush.bf16.msra.mxu0 %v1624
  %1637 = vmatpush.bf16.msra.mxu0 %v1623
  %1638 = vmatpush.bf16.msra.mxu0 %v1622
  %1639 = vmatpush.bf16.msra.mxu0 %v1621
  %1640 = vmatmul.bf16.gmra.mxu0 %v1630
  %v1641 = vpop.f32.mrf.mxu0
  %v1642 = vadd.f32 %v1604, %v1641
  %v1643 = vpop.f32.mrf.mxu0
  %v1644 = vadd.f32 %v1604, %v1643
  %1645 = vdwg.mxu0
  %v1646 = vadd.f32 %v1422, %v1642
  %v1647 = vadd.f32 %v1423, %v1644
  %v1648 = vsel %vm194, %v1646, 0.0
  %1649 = vadd.xlane.f32.xlu0 %v1648
  %v1650 = vpop.xlane.xlu0 %1649
  %v1651 = vsel %vm198, %v1647, 0.0
  %1652 = vadd.xlane.f32.xlu0 %v1651
  %v1653 = vpop.xlane.xlu0 %1652
  %v1654 = vmul.f32 %v1650, %v208
  %v1655 = vmul.f32 %v1653, %v208
  %v1656 = vsub.f32 %v1646, %v1654
  %v1657 = vsub.f32 %v1647, %v1655
  %v1658 = vmul.f32 %v1656, %v1656
  %v1659 = vmul.f32 %v1657, %v1657
  %v1660 = vsel %vm194, %v1658, 0.0
  %1661 = vadd.xlane.f32.xlu0 %v1660
  %v1662 = vpop.xlane.xlu0 %1661
  %v1663 = vsel %vm198, %v1659, 0.0
  %1664 = vadd.xlane.f32.xlu0 %v1663
  %v1665 = vpop.xlane.xlu0 %1664
  %v1666 = vmul.f32 %v1662, %v208
  %v1667 = vmul.f32 %v1665, %v208
  %v1668 = vadd.f32 %v1666, 1e-12
  %v1669 = vadd.f32 %v1667, 1e-12
  %v1670 = vrsqrt.pop %v1668
  %v1671 = vmul.f32 %v1670, %v1668
  %v1672 = vmul.f32 %v1671, %v1670
  %v1673 = vmul.f32 0.5, %v1672
  %v1674 = vsub.f32 1.5, %v1673
  %v1675 = vmul.f32 %v1670, %v1674
  %vm1676 = vweird.f32 %v1668
  %vm1677 = vweird.f32 %v1670
  %vm1678 = vmor %vm1676, %vm1677
  %v1679 = vsel %vm1678, %v1670, %v1675
  %v1680 = vrsqrt.pop %v1669
  %v1681 = vmul.f32 %v1680, %v1669
  %v1682 = vmul.f32 %v1681, %v1680
  %v1683 = vmul.f32 0.5, %v1682
  %v1684 = vsub.f32 1.5, %v1683
  %v1685 = vmul.f32 %v1680, %v1684
  %vm1686 = vweird.f32 %v1669
  %vm1687 = vweird.f32 %v1680
  %vm1688 = vmor %vm1686, %vm1687
  %v1689 = vsel %vm1688, %v1680, %v1685
  %v1690 = vmul.f32 %v1656, %v1679
  %v1691 = vmul.f32 %v1657, %v1689
  %v1692 = vperm.slane %v39, 0
  %v1693 = vmul.f32 %v1690, %v1692
  %v1694 = vmul.f32 %v1691, %v1692
  %v1695 = vperm.slane %v39, 1
  %v1696 = vadd.f32 %v1693, %v1695
  %v1697 = vadd.f32 %v1694, %v1695
  %1698 = vst.msk [vmem:[%s11] sm:$0xff] %vm194, %v1696
  %1699 = vst.msk [vmem:[%s11 + $0x8] sm:$0x3] %vm198, %v1697
  // Predicated region
  $region46: #{vit_forward.1} parent=0 // pred_check
    _
  $region47: #{vit_forward.1} parent=0 // pred_check_branch
    %1701 = sbr.rel (0) target = $region49
  $region48: #{vit_forward.1} parent=0 // pred_region
    _
  $region49: #{vit_forward.1} parent=0 // pred_fallthru
    _
  // Predicated region
  $region50: #{vit_forward.1} parent=0 // pred_check
    _
  $region51: #{vit_forward.1} parent=0 // pred_check_branch
    %1703 = sbr.rel (0) target = $region53
  $region52: #{vit_forward.1} parent=0 // pred_region
    _
  $region53: #{vit_forward.1} parent=0 // pred_fallthru
    _

</llo_original>
